<compile_context>
chip_gen: v6e
topology: v6e:2x2x1
jax: 0.10.0
libtpu: 0.0.40
codegen_flags: <defaults>
</compile_context>

<pallas_src>
import functools

import jax
import jax.numpy as jnp
from jax.experimental import pallas as pl
from jax.experimental.pallas import tpu as pltpu


def _bondi_kernel(x_ref, *refs, num_tanh_layers, compute_dtype):
    """refs = (fused_params..., out_ref).

    Fused params (both branches stacked / block-diagonal, weights already
    transposed to (out, in)):
        [w0 (2h0,1), b0 (2h0,1),
         W1 (2h1,2h0), b1 (2h1,1), ...,
         Wout (2,2h_last), bout (2,1)]
    x_ref: (1, tile_n) f32.  out_ref: (2, tile_n) f32.
    """
    o_ref = refs[-1]
    p = refs[:-1]

    x = x_ref[...]                                     # (1, tile_n)

    # Layer 0: contraction dim is 1 -> pure VPU broadcast FMA, skip the MXU.
    w0 = p[0][...]                                     # (2*h0, 1)
    b0 = p[1][...]                                     # (2*h0, 1)
    h = jnp.tanh(w0 * x + b0).astype(compute_dtype)    # (2*h0, tile_n)

    # Hidden layers: fused block-diagonal matmuls, f32 accumulation on MXU.
    for j in range(1, num_tanh_layers):
        w = p[2 * j][...].astype(compute_dtype)        # (2*h_j, 2*h_{j-1})
        b = p[2 * j + 1][...]                          # (2*h_j, 1) lane-bcast
        h = jnp.tanh(
            jnp.dot(w, h, preferred_element_type=jnp.float32) + b
        ).astype(compute_dtype)

    # Output layer: block-diagonal (2, 2*h_last) -> (2, tile_n) written directly.
    w_out = p[2 * num_tanh_layers][...].astype(compute_dtype)
    b_out = p[2 * num_tanh_layers + 1][...]            # (2, 1)
    o_ref[...] = (
        jnp.dot(w_out, h, preferred_element_type=jnp.float32) + b_out
    ).astype(o_ref.dtype)


def fuse_branch_params(params1, params2):
    """Fuse the two branches into transposed / block-diagonal kernel params.

    Input convention per branch (x @ W + b orientation):
        [W0 (1,h0), b0 (1,h0), W1 (h0,h1), b1 (1,h1), ..., Wout (h_last,1), bout (1,1)]
    """
    fused = []
    n_pairs = len(params1) // 2
    for j in range(n_pairs):
        w1, b1 = params1[2 * j], params1[2 * j + 1]
        w2, b2 = params2[2 * j], params2[2 * j + 1]
        if j == 0:
            # Shared scalar input: stack the two (h0, 1) columns vertically.
            w = jnp.concatenate([w1.T, w2.T], axis=0)
        else:
            # Independent branches: block-diagonal (2*out, 2*in).
            w = jax.scipy.linalg.block_diag(w1.T, w2.T)
        b = jnp.concatenate([b1.reshape(-1, 1), b2.reshape(-1, 1)], axis=0)
        fused.append(w.astype(jnp.float32))
        fused.append(b.astype(jnp.float32))
    return fused


def bondi_forward(x, params1, params2, *, tile_n=None,
                  compute_dtype=jnp.float32):
    """x: (N,) float. params{1,2}: flat list [W0, b0, ..., Wout, bout].

    Returns (2, N) float32, matching the PyTorch module's forward.
    Arbitrary N is supported (padded internally to a multiple of tile_n).
    """
    N = x.shape[0]
    num_tanh_layers = len(params1) // 2 - 1

    fused = fuse_branch_params(params1, params2)

    if tile_n is None:
        # Large tiles to amortise per-grid-step overhead, but keep >= 2 grid
        # steps where possible so v7x megacore can shard across its 2 TCs.
        half = pl.cdiv(max(N, 2), 2)
        tile_n = int(min(8192, max(128, pl.cdiv(half, 128) * 128)))
    assert tile_n % 128 == 0, "tile_n must be a multiple of 128"

    n_blocks = pl.cdiv(N, tile_n)
    n_pad = n_blocks * tile_n

    x_row = x.astype(jnp.float32).reshape(1, N)
    if n_pad != N:
        x_row = jnp.pad(x_row, ((0, 0), (0, n_pad - N)))

    def full_spec(arr):
        nd = arr.ndim
        return pl.BlockSpec(arr.shape, lambda i, _nd=nd: (0,) * _nd)

    in_specs = [pl.BlockSpec((1, tile_n), lambda i: (0, i))]
    in_specs += [full_spec(p) for p in fused]
    out_spec = pl.BlockSpec((2, tile_n), lambda i: (0, i))

    kernel = functools.partial(
        _bondi_kernel,
        num_tanh_layers=num_tanh_layers,
        compute_dtype=compute_dtype,
    )

    out = pl.pallas_call(
        kernel,
        out_shape=jax.ShapeDtypeStruct((2, n_pad), jnp.float32),
        grid_spec=pltpu.PrefetchScalarGridSpec(
            num_scalar_prefetch=0,
            grid=(n_blocks,),
            in_specs=in_specs,
            out_specs=out_spec,
        ),
        compiler_params=pltpu.CompilerParams(
            dimension_semantics=("parallel",)),
    )(x_row, *fused)

    return out[:, :N]


def init_branch_params(key, hidden_sizes):
    """Deterministic init mimicking nn.Linear default (U[-1/sqrt(fan_in), +])."""
    sizes = [1] + list(hidden_sizes) + [1]
    params = []
    for j in range(len(sizes) - 1):
        fan_in, fan_out = sizes[j], sizes[j + 1]
        key, kw, kb = jax.random.split(key, 3)
        bound = 1.0 / jnp.sqrt(jnp.float32(fan_in))
        w = jax.random.uniform(kw, (fan_in, fan_out), jnp.float32,
                               minval=-bound, maxval=bound)
        b = jax.random.uniform(kb, (1, fan_out), jnp.float32,
                               minval=-bound, maxval=bound)
        params += [w, b]
    return params, key


def reference_forward(x, params1, params2):
    """Pure-JAX reference of the PyTorch forward for verification."""
    def branch(params):
        h = x.reshape(-1, 1)
        n_layers = len(params) // 2 - 1
        for layer in range(n_layers):
            h = jnp.tanh(h @ params[2 * layer] + params[2 * layer + 1])
        return h @ params[2 * n_layers] + params[2 * n_layers + 1]
    y1 = branch(params1).reshape(1, -1)
    y2 = branch(params2).reshape(1, -1)
    return jnp.concatenate([y1, y2], axis=0)


# TODO(synk): training loop / optimizer / scheduler / loss history of the
# PyTorch module are host-side orchestration and are not part of this kernel.

if __name__ == "__main__":
    hidden_sizes = [32, 32]   # BONDI([32, 32])
    N = 2048                  # number of collocation points

    key = jax.random.PRNGKey(0)
    params1, key = init_branch_params(key, hidden_sizes)
    params2, key = init_branch_params(key, hidden_sizes)
    key, kx = jax.random.split(key)
    x = jax.random.uniform(kx, (N,), jnp.float32)  # points in [0, 1)

    y = bondi_forward(x, params1, params2)
    y = jax.block_until_ready(y)

    y_ref = reference_forward(x, params1, params2)
    assert y.shape == (2, N)
    assert jnp.allclose(y, y_ref, atol=2e-5, rtol=1e-4), "mismatch vs reference"

    print("KERNEL_OK")
</pallas_src>

<mosaic_0001>
module attributes {stable_mosaic.version = 11 : i64} {
  func.func @_bondi_kernel(%arg0: i32, %arg1: memref<1x1024xf32, #tpu.memory_space<vmem>>, %arg2: memref<64x1xf32, #tpu.memory_space<vmem>>, %arg3: memref<64x1xf32, #tpu.memory_space<vmem>>, %arg4: memref<64x64xf32, #tpu.memory_space<vmem>>, %arg5: memref<64x1xf32, #tpu.memory_space<vmem>>, %arg6: memref<2x64xf32, #tpu.memory_space<vmem>>, %arg7: memref<2x1xf32, #tpu.memory_space<vmem>>, %arg8: memref<2x1024xf32, #tpu.memory_space<vmem>>) attributes {dimension_semantics = [#tpu.dimension_semantics<parallel>], iteration_bounds = array<i64: 2>, scalar_prefetch = 0 : i64, scratch_operands = 0 : i64, tpu.core_type = #tpu.core_type<tc>, window_params = [{transform_indices = @transform_0, window_bounds = array<i64: 1, 1024>}, {pipeline_mode = #tpu.pipeline_mode<synchronous>, transform_indices = @transform_1, window_bounds = array<i64: 64, 1>}, {pipeline_mode = #tpu.pipeline_mode<synchronous>, transform_indices = @transform_2, window_bounds = array<i64: 64, 1>}, {pipeline_mode = #tpu.pipeline_mode<synchronous>, transform_indices = @transform_3, window_bounds = array<i64: 64, 64>}, {pipeline_mode = #tpu.pipeline_mode<synchronous>, transform_indices = @transform_4, window_bounds = array<i64: 64, 1>}, {pipeline_mode = #tpu.pipeline_mode<synchronous>, transform_indices = @transform_5, window_bounds = array<i64: 2, 64>}, {pipeline_mode = #tpu.pipeline_mode<synchronous>, transform_indices = @transform_6, window_bounds = array<i64: 2, 1>}, {transform_indices = @transform_7, window_bounds = array<i64: 2, 1024>}]} {
    %c0 = arith.constant 0 : index
    %c0_0 = arith.constant 0 : index
    %0 = vector.load %arg1[%c0, %c0_0] : memref<1x1024xf32, #tpu.memory_space<vmem>>, vector<1x1024xf32>
    %c0_1 = arith.constant 0 : index
    %c0_2 = arith.constant 0 : index
    %1 = vector.load %arg2[%c0_1, %c0_2] : memref<64x1xf32, #tpu.memory_space<vmem>>, vector<64x1xf32>
    %c0_3 = arith.constant 0 : index
    %c0_4 = arith.constant 0 : index
    %2 = vector.load %arg3[%c0_3, %c0_4] : memref<64x1xf32, #tpu.memory_space<vmem>>, vector<64x1xf32>
    %3 = vector.broadcast %1 : vector<64x1xf32> to vector<64x1024xf32>
    %4 = vector.broadcast %0 : vector<1x1024xf32> to vector<64x1024xf32>
    %5 = arith.mulf %3, %4 : vector<64x1024xf32>
    %6 = vector.broadcast %2 : vector<64x1xf32> to vector<64x1024xf32>
    %7 = arith.addf %5, %6 : vector<64x1024xf32>
    %8 = math.tanh %7 : vector<64x1024xf32>
    %c0_5 = arith.constant 0 : index
    %c0_6 = arith.constant 0 : index
    %9 = vector.load %arg4[%c0_5, %c0_6] : memref<64x64xf32, #tpu.memory_space<vmem>>, vector<64x64xf32>
    %c0_7 = arith.constant 0 : index
    %c0_8 = arith.constant 0 : index
    %10 = vector.load %arg5[%c0_7, %c0_8] : memref<64x1xf32, #tpu.memory_space<vmem>>, vector<64x1xf32>
    %cst = arith.constant dense<0.000000e+00> : vector<64x1024xf32>
    %11 = tpu.matmul %9, %8, %cst {dimension_numbers = #tpu.dot_dimension_numbers<[1], [0], [0], [1], [0, 0, 1, 1], [], []>} : vector<64x64xf32>, vector<64x1024xf32>, vector<64x1024xf32> -> vector<64x1024xf32>
    %12 = vector.broadcast %10 : vector<64x1xf32> to vector<64x1024xf32>
    %13 = arith.addf %11, %12 : vector<64x1024xf32>
    %14 = math.tanh %13 : vector<64x1024xf32>
    %c0_9 = arith.constant 0 : index
    %c0_10 = arith.constant 0 : index
    %15 = vector.load %arg6[%c0_9, %c0_10] : memref<2x64xf32, #tpu.memory_space<vmem>>, vector<2x64xf32>
    %c0_11 = arith.constant 0 : index
    %c0_12 = arith.constant 0 : index
    %16 = vector.load %arg7[%c0_11, %c0_12] : memref<2x1xf32, #tpu.memory_space<vmem>>, vector<2x1xf32>
    %cst_13 = arith.constant dense<0.000000e+00> : vector<2x1024xf32>
    %17 = tpu.matmul %15, %14, %cst_13 {dimension_numbers = #tpu.dot_dimension_numbers<[1], [0], [0], [1], [0, 0, 1, 1], [], []>} : vector<2x64xf32>, vector<64x1024xf32>, vector<2x1024xf32> -> vector<2x1024xf32>
    %18 = vector.broadcast %16 : vector<2x1xf32> to vector<2x1024xf32>
    %19 = arith.addf %17, %18 : vector<2x1024xf32>
    %c0_14 = arith.constant 0 : index
    %c0_15 = arith.constant 0 : index
    %20 = vector.load %arg8[%c0_14, %c0_15] : memref<2x1024xf32, #tpu.memory_space<vmem>>, vector<2x1024xf32>
    tpu.vector_store %arg8[%c0_14, %c0_15], %19 {strides = array<i32>} : memref<2x1024xf32, #tpu.memory_space<vmem>>, vector<2x1024xf32>,
    return
  }
  func.func @transform_0(%arg0: i32) -> (i32, i32) {
    %c0_i32 = arith.constant 0 : i32
    %c0_i32_0 = arith.constant 0 : i32
    return %c0_i32, %arg0 : i32, i32
  }
  func.func @transform_1(%arg0: i32) -> (i32, i32) {
    %c0_i32 = arith.constant 0 : i32
    %c0_i32_0 = arith.constant 0 : i32
    %c0_i32_1 = arith.constant 0 : i32
    return %c0_i32, %c0_i32_0 : i32, i32
  }
  func.func @transform_2(%arg0: i32) -> (i32, i32) {
    %c0_i32 = arith.constant 0 : i32
    %c0_i32_0 = arith.constant 0 : i32
    %c0_i32_1 = arith.constant 0 : i32
    return %c0_i32, %c0_i32_0 : i32, i32
  }
  func.func @transform_3(%arg0: i32) -> (i32, i32) {
    %c0_i32 = arith.constant 0 : i32
    %c0_i32_0 = arith.constant 0 : i32
    %c0_i32_1 = arith.constant 0 : i32
    return %c0_i32, %c0_i32_0 : i32, i32
  }
  func.func @transform_4(%arg0: i32) -> (i32, i32) {
    %c0_i32 = arith.constant 0 : i32
    %c0_i32_0 = arith.constant 0 : i32
    %c0_i32_1 = arith.constant 0 : i32
    return %c0_i32, %c0_i32_0 : i32, i32
  }
  func.func @transform_5(%arg0: i32) -> (i32, i32) {
    %c0_i32 = arith.constant 0 : i32
    %c0_i32_0 = arith.constant 0 : i32
    %c0_i32_1 = arith.constant 0 : i32
    return %c0_i32, %c0_i32_0 : i32, i32
  }
  func.func @transform_6(%arg0: i32) -> (i32, i32) {
    %c0_i32 = arith.constant 0 : i32
    %c0_i32_0 = arith.constant 0 : i32
    %c0_i32_1 = arith.constant 0 : i32
    return %c0_i32, %c0_i32_0 : i32, i32
  }
  func.func @transform_7(%arg0: i32) -> (i32, i32) {
    %c0_i32 = arith.constant 0 : i32
    %c0_i32_0 = arith.constant 0 : i32
    return %c0_i32, %arg0 : i32, i32
  }
}

</mosaic_0001>

<llo_original>
// kernel: tpu_custom_call.1
$region0: #{tpu_custom_call.1}
  #allocation0 [shape = 'u32[]', space=smem, size = 0x4, offset = 0x4, fixed_abs, tag = 'smem constant byte address 0x4 - core index']
  #allocation1 [shape = 'u32[144,128]{1,0:T(1,128)}', space=vmem, size = 0x12000, scoped, tag = 'internal scratch']
  %s0 = inlined_call_operand.vmem [shape: f32[1,2048], index: 0, kind: input, shape index: {}]
  %s1 = inlined_call_operand.vmem [shape: f32[64,1], index: 1, kind: input, shape index: {}]
  %s2 = inlined_call_operand.vmem [shape: f32[64,1], index: 2, kind: input, shape index: {}]
  %s3 = inlined_call_operand.vmem [shape: f32[64,64], index: 3, kind: input, shape index: {}]
  %s4 = inlined_call_operand.vmem [shape: f32[64,1], index: 4, kind: input, shape index: {}]
  %s5 = inlined_call_operand.vmem [shape: f32[2,64], index: 5, kind: input, shape index: {}]
  %s6 = inlined_call_operand.vmem [shape: f32[2,1], index: 6, kind: input, shape index: {}]
  %s7 = inlined_call_operand.hbm [shape: f32[2,2048], index: 7, kind: output, shape index: {}]
  %s8 = sld [smem:[#allocation0]]
  $region61: #{tpu_custom_call.1} parent=0
    _
  %s10 = ssub.s32 1, %s8
  %s11 = scalar_select 0, %s10, %s8
  $region1: #{tpu_custom_call.1} parent=0
    #allocation2 [shape = 'u8[16384]{0}', space=vmem, size = 0x4000, scoped, tag = 'output window, operand 0']
    #allocation3 [shape = 's32[2]{0}', space=sflag, size = 0x8, scoped, tag = 'scoped memory for tpu_custom_call.1']
    %12 = vsyncpa [#allocation3], 0
    %s13 = scalar_lea.sflag [#allocation3], 1
    %14 = vsyncpa %s13, 0
    loop: start=0, step=1, limit=4
    $region2: #{tpu_custom_call.1} parent=1 // loop_pre_header
      _
    $region3: #{tpu_custom_call.1} parent=1 // loop_header
      %s16 = sphi 0, %s20
      %p17 = scmp.ge.s32.totalorder %s16, 4
      %s26 = sphi 0, %s28
      %s29 = sphi 0, %s26
      %s30 = sphi 0, %s29
      %s46 = sphi 0, %s30
      %s50 = sphi 0, %s50
      %s52 = sphi 0, %s50
      %s53 = sphi 0, %s52
      %s67 = sphi 0, %s53
      %s71 = sphi 0, %s71
      %s73 = sphi 0, %s71
      %s74 = sphi 0, %s73
      %s88 = sphi 0, %s74
      %s92 = sphi 0, %s92
      %s94 = sphi 0, %s92
      %s95 = sphi 0, %s94
      %s109 = sphi 0, %s95
      %s113 = sphi 0, %s113
      %s115 = sphi 0, %s113
      %s116 = sphi 0, %s115
      %s130 = sphi 0, %s116
      %s134 = sphi 0, %s134
      %s136 = sphi 0, %s134
      %s137 = sphi 0, %s136
      %s151 = sphi 0, %s137
      %s155 = sphi 0, %s155
      %s157 = sphi 0, %s155
      %s158 = sphi 0, %s157
      %s172 = sphi 0, %s158
      %s178 = sphi 0, %s180
      %s181 = sphi 0, %s178
      %s182 = sphi 0, %s181
      %s198 = sphi 0, %s182
    $region4: #{tpu_custom_call.1} parent=1 // loop_header_branch
      %19 = sbr.rel (%p17) target = $region8
    $region5: #{tpu_custom_call.1} parent=1 // loop_body
      %s21 = ssub.s32 %s16, 1
      %s22 = ssub.s32 %s16, 2
      %s23 = sadd.s32 %s16, 1
      %s24 = ssub.s32 %s16, %s23
      %p25 = scmp.eq.s32.totalorder %s24, 0
      %s27 = sadd.s32 %s26, 1
      %s28 = scalar_select %p25, %s26, %s27
      %p31 = pneg %p25
      %p32 = scmp.eq.s32.totalorder %s16, 1
      %p33 = por %p31, %p32
      %p34 = scmp.ne.s32.totalorder %s26, %s29
      %p35 = scmp.eq.s32.totalorder %s16, 0
      %p36 = por %p34, %p35
      %p37 = scmp.ne.s32.totalorder %s26, %s29
      %p38 = scmp.eq.s32.totalorder %s21, 1
      %p39 = por %p37, %p38
      %p40 = scmp.ne.s32.totalorder %s29, %s30
      %p41 = scmp.eq.s32.totalorder %s21, 0
      %p42 = por %p40, %p41
      %p43 = scmp.ne.s32.totalorder %s29, %s30
      %p44 = scmp.eq.s32.totalorder %s22, 1
      %p45 = por %p43, %p44
      %p47 = scmp.ne.s32.totalorder %s30, %s46
      %p48 = scmp.eq.s32.totalorder %s22, 0
      %p49 = por %p47, %p48
      %s51 = sadd.s32 %s50, 1
      %p54 = scmp.eq.s32.totalorder %s16, 1
      %p55 = scmp.ne.s32.totalorder %s50, %s52
      %p56 = scmp.eq.s32.totalorder %s16, 0
      %p57 = por %p55, %p56
      %p58 = scmp.ne.s32.totalorder %s50, %s52
      %p59 = scmp.eq.s32.totalorder %s21, 1
      %p60 = por %p58, %p59
      %p61 = scmp.ne.s32.totalorder %s52, %s53
      %p62 = scmp.eq.s32.totalorder %s21, 0
      %p63 = por %p61, %p62
      %p64 = scmp.ne.s32.totalorder %s52, %s53
      %p65 = scmp.eq.s32.totalorder %s22, 1
      %p66 = por %p64, %p65
      %p68 = scmp.ne.s32.totalorder %s53, %s67
      %p69 = scmp.eq.s32.totalorder %s22, 0
      %p70 = por %p68, %p69
      %s72 = sadd.s32 %s71, 1
      %p75 = scmp.eq.s32.totalorder %s16, 1
      %p76 = scmp.ne.s32.totalorder %s71, %s73
      %p77 = scmp.eq.s32.totalorder %s16, 0
      %p78 = por %p76, %p77
      %p79 = scmp.ne.s32.totalorder %s71, %s73
      %p80 = scmp.eq.s32.totalorder %s21, 1
      %p81 = por %p79, %p80
      %p82 = scmp.ne.s32.totalorder %s73, %s74
      %p83 = scmp.eq.s32.totalorder %s21, 0
      %p84 = por %p82, %p83
      %p85 = scmp.ne.s32.totalorder %s73, %s74
      %p86 = scmp.eq.s32.totalorder %s22, 1
      %p87 = por %p85, %p86
      %p89 = scmp.ne.s32.totalorder %s74, %s88
      %p90 = scmp.eq.s32.totalorder %s22, 0
      %p91 = por %p89, %p90
      %s93 = sadd.s32 %s92, 1
      %p96 = scmp.eq.s32.totalorder %s16, 1
      %p97 = scmp.ne.s32.totalorder %s92, %s94
      %p98 = scmp.eq.s32.totalorder %s16, 0
      %p99 = por %p97, %p98
      %p100 = scmp.ne.s32.totalorder %s92, %s94
      %p101 = scmp.eq.s32.totalorder %s21, 1
      %p102 = por %p100, %p101
      %p103 = scmp.ne.s32.totalorder %s94, %s95
      %p104 = scmp.eq.s32.totalorder %s21, 0
      %p105 = por %p103, %p104
      %p106 = scmp.ne.s32.totalorder %s94, %s95
      %p107 = scmp.eq.s32.totalorder %s22, 1
      %p108 = por %p106, %p107
      %p110 = scmp.ne.s32.totalorder %s95, %s109
      %p111 = scmp.eq.s32.totalorder %s22, 0
      %p112 = por %p110, %p111
      %s114 = sadd.s32 %s113, 1
      %p117 = scmp.eq.s32.totalorder %s16, 1
      %p118 = scmp.ne.s32.totalorder %s113, %s115
      %p119 = scmp.eq.s32.totalorder %s16, 0
      %p120 = por %p118, %p119
      %p121 = scmp.ne.s32.totalorder %s113, %s115
      %p122 = scmp.eq.s32.totalorder %s21, 1
      %p123 = por %p121, %p122
      %p124 = scmp.ne.s32.totalorder %s115, %s116
      %p125 = scmp.eq.s32.totalorder %s21, 0
      %p126 = por %p124, %p125
      %p127 = scmp.ne.s32.totalorder %s115, %s116
      %p128 = scmp.eq.s32.totalorder %s22, 1
      %p129 = por %p127, %p128
      %p131 = scmp.ne.s32.totalorder %s116, %s130
      %p132 = scmp.eq.s32.totalorder %s22, 0
      %p133 = por %p131, %p132
      %s135 = sadd.s32 %s134, 1
      %p138 = scmp.eq.s32.totalorder %s16, 1
      %p139 = scmp.ne.s32.totalorder %s134, %s136
      %p140 = scmp.eq.s32.totalorder %s16, 0
      %p141 = por %p139, %p140
      %p142 = scmp.ne.s32.totalorder %s134, %s136
      %p143 = scmp.eq.s32.totalorder %s21, 1
      %p144 = por %p142, %p143
      %p145 = scmp.ne.s32.totalorder %s136, %s137
      %p146 = scmp.eq.s32.totalorder %s21, 0
      %p147 = por %p145, %p146
      %p148 = scmp.ne.s32.totalorder %s136, %s137
      %p149 = scmp.eq.s32.totalorder %s22, 1
      %p150 = por %p148, %p149
      %p152 = scmp.ne.s32.totalorder %s137, %s151
      %p153 = scmp.eq.s32.totalorder %s22, 0
      %p154 = por %p152, %p153
      %s156 = sadd.s32 %s155, 1
      %p159 = scmp.eq.s32.totalorder %s16, 1
      %p160 = scmp.ne.s32.totalorder %s155, %s157
      %p161 = scmp.eq.s32.totalorder %s16, 0
      %p162 = por %p160, %p161
      %p163 = scmp.ne.s32.totalorder %s155, %s157
      %p164 = scmp.eq.s32.totalorder %s21, 1
      %p165 = por %p163, %p164
      %p166 = scmp.ne.s32.totalorder %s157, %s158
      %p167 = scmp.eq.s32.totalorder %s21, 0
      %p168 = por %p166, %p167
      %p169 = scmp.ne.s32.totalorder %s157, %s158
      %p170 = scmp.eq.s32.totalorder %s22, 1
      %p171 = por %p169, %p170
      %p173 = scmp.ne.s32.totalorder %s158, %s172
      %p174 = scmp.eq.s32.totalorder %s22, 0
      %p175 = por %p173, %p174
      %s176 = ssub.s32 %s16, %s23
      %p177 = scmp.eq.s32.totalorder %s176, 0
      %s179 = sadd.s32 %s178, 1
      %s180 = scalar_select %p177, %s178, %s179
      %p183 = pneg %p177
      %p184 = scmp.eq.s32.totalorder %s16, 1
      %p185 = por %p183, %p184
      %p186 = scmp.ne.s32.totalorder %s178, %s181
      %p187 = scmp.eq.s32.totalorder %s16, 0
      %p188 = por %p186, %p187
      %p189 = scmp.ne.s32.totalorder %s178, %s181
      %p190 = scmp.eq.s32.totalorder %s21, 1
      %p191 = por %p189, %p190
      %p192 = scmp.ne.s32.totalorder %s181, %s182
      %p193 = scmp.eq.s32.totalorder %s21, 0
      %p194 = por %p192, %p193
      %p195 = scmp.ne.s32.totalorder %s181, %s182
      %p196 = scmp.eq.s32.totalorder %s22, 1
      %p197 = por %p195, %p196
      %p199 = scmp.ne.s32.totalorder %s182, %s198
      %p200 = scmp.eq.s32.totalorder %s22, 0
      %p201 = por %p199, %p200
      %p202 = scmp.le.s32.totalorder 1, %s16
      %p203 = scmp.lt.s32.totalorder %s16, 3
      %p204 = pnand %p202, %p203
      %p205 = pneg %p204
      // Predicated region
      $region9: #{tpu_custom_call.1} parent=5 // pred_check
        _
      $region10: #{tpu_custom_call.1} parent=5 // pred_check_branch
        %207 = sbr.rel (%p204) target = $region12
      $region11: #{tpu_custom_call.1} parent=5 // pred_region
        %s208 = ssub.s32 %s16, 1
        // Predicated region
        $region13: #{tpu_custom_call.1} parent=11 // pred_check
          %p209 = pneg %p63
        $region14: #{tpu_custom_call.1} parent=11 // pred_check_branch
          %211 = sbr.rel (%p209) target = $region16
        $region15: #{tpu_custom_call.1} parent=11 // pred_region
          _
        $region16: #{tpu_custom_call.1} parent=11 // pred_fallthru
          _
        // Predicated region
        $region17: #{tpu_custom_call.1} parent=11 // pred_check
          %p212 = pneg %p84
        $region18: #{tpu_custom_call.1} parent=11 // pred_check_branch
          %214 = sbr.rel (%p212) target = $region20
        $region19: #{tpu_custom_call.1} parent=11 // pred_region
          _
        $region20: #{tpu_custom_call.1} parent=11 // pred_fallthru
          _
        // Predicated region
        $region21: #{tpu_custom_call.1} parent=11 // pred_check
          %p215 = pneg %p105
        $region22: #{tpu_custom_call.1} parent=11 // pred_check_branch
          %217 = sbr.rel (%p215) target = $region24
        $region23: #{tpu_custom_call.1} parent=11 // pred_region
          _
        $region24: #{tpu_custom_call.1} parent=11 // pred_fallthru
          _
        // Predicated region
        $region25: #{tpu_custom_call.1} parent=11 // pred_check
          %p218 = pneg %p126
        $region26: #{tpu_custom_call.1} parent=11 // pred_check_branch
          %220 = sbr.rel (%p218) target = $region28
        $region27: #{tpu_custom_call.1} parent=11 // pred_region
          _
        $region28: #{tpu_custom_call.1} parent=11 // pred_fallthru
          _
        // Predicated region
        $region29: #{tpu_custom_call.1} parent=11 // pred_check
          %p221 = pneg %p147
        $region30: #{tpu_custom_call.1} parent=11 // pred_check_branch
          %223 = sbr.rel (%p221) target = $region32
        $region31: #{tpu_custom_call.1} parent=11 // pred_region
          _
        $region32: #{tpu_custom_call.1} parent=11 // pred_fallthru
          _
        // Predicated region
        $region33: #{tpu_custom_call.1} parent=11 // pred_check
          %p224 = pneg %p168
        $region34: #{tpu_custom_call.1} parent=11 // pred_check_branch
          %226 = sbr.rel (%p224) target = $region36
        $region35: #{tpu_custom_call.1} parent=11 // pred_region
          _
        $region36: #{tpu_custom_call.1} parent=11 // pred_fallthru
          _
      $region12: #{tpu_custom_call.1} parent=5 // pred_fallthru
        _
      %p227 = scmp.lt.s32.totalorder %s16, 2
      // Predicated region
      $region37: #{tpu_custom_call.1} parent=5 // pred_check
        %p228 = pneg %p227
      $region38: #{tpu_custom_call.1} parent=5 // pred_check_branch
        %230 = sbr.rel (%p228) target = $region40
      $region39: #{tpu_custom_call.1} parent=5 // pred_region
        // Predicated region
        $region41: #{tpu_custom_call.1} parent=39 // pred_check
          %p231 = pneg %p36
        $region42: #{tpu_custom_call.1} parent=39 // pred_check_branch
          %233 = sbr.rel (%p231) target = $region44
        $region43: #{tpu_custom_call.1} parent=39 // pred_region
          %s234 = smul.u32 8, %s16
          %p235 = scmp.lt.s32.totalorder %s234, 15
          %s236 = scalar_select %p235, %s234, 15
          %s237 = scalar_lea.vmem %s0, %s236
          %s238 = smul.u32 8, %s16
        $region44: #{tpu_custom_call.1} parent=39 // pred_fallthru
          _
      $region40: #{tpu_custom_call.1} parent=5 // pred_fallthru
        _
      %p239 = scmp.le.s32.totalorder 1, %s16
      %p240 = scmp.lt.s32.totalorder %s16, 3
      %p241 = pnand %p239, %p240
      %p242 = pneg %p241
      // Predicated region
      $region45: #{tpu_custom_call.1} parent=5 // pred_check
        _
      $region46: #{tpu_custom_call.1} parent=5 // pred_check_branch
        %244 = sbr.rel (%p241) target = $region48
      $region47: #{tpu_custom_call.1} parent=5 // pred_region
        %s245 = ssub.s32 %s16, 1
        %s246 = smul.u32 8, %s21
        %p247 = scmp.lt.s32.totalorder %s246, 15
        %s248 = scalar_select %p247, %s246, 15
        %s249 = scalar_lea.vmem %s0, %s248
        %p250 = pneg %p42
        %p251 = pneg %p39
        %p252 = pneg %p63
        %p253 = pneg %p60
        %p254 = pneg %p84
        %p255 = pneg %p81
        %p256 = pneg %p105
        %p257 = pneg %p102
        %p258 = pneg %p126
        %p259 = pneg %p123
        %p260 = pneg %p147
        %p261 = pneg %p144
        %p262 = pneg %p168
        %p263 = pneg %p165
        %p264 = pneg %p194
        %p265 = pneg %p191
        %s266 = sand.u32 %s181, 1
        %s267 = scalar_lea.sflag [#allocation3], %s266
        %s268 = sand.u32 %s181, 1
        %s269 = smul.addr %s268, 16
        %s270 = scalar_lea.vmem [#allocation2], %s269
        %s271 = smul.u32 8, %s21
        %p272 = scmp.lt.s32.totalorder %s271, 15
        %s273 = scalar_select %p272, %s271, 15
        %s274 = scalar_lea.vmem %s0, %s273
        %s275 = smul.u32 8, %s21
        %s276 = smul.u32 8, %s21
        %v277 = vld [vmem:[%s274] sm:$0xff]
        %v278 = vld [vmem:[%s1] sm:$0xff]
        %v279 = vld [vmem:[%s1 + $0x8] sm:$0xff]
        %v280 = vld [vmem:[%s1 + $0x10] sm:$0xff]
        %v281 = vld [vmem:[%s1 + $0x18] sm:$0xff]
        %v282 = vld [vmem:[%s1 + $0x20] sm:$0xff]
        %v283 = vld [vmem:[%s1 + $0x28] sm:$0xff]
        %v284 = vld [vmem:[%s1 + $0x30] sm:$0xff]
        %v285 = vld [vmem:[%s1 + $0x38] sm:$0xff]
        %v286 = vld [vmem:[%s2] sm:$0xff]
        %v287 = vld [vmem:[%s2 + $0x8] sm:$0xff]
        %v288 = vld [vmem:[%s2 + $0x10] sm:$0xff]
        %v289 = vld [vmem:[%s2 + $0x18] sm:$0xff]
        %v290 = vld [vmem:[%s2 + $0x20] sm:$0xff]
        %v291 = vld [vmem:[%s2 + $0x28] sm:$0xff]
        %v292 = vld [vmem:[%s2 + $0x30] sm:$0xff]
        %v293 = vld [vmem:[%s2 + $0x38] sm:$0xff]
        %295 = vset.pattern.permute.xlu0 0
        %296 = vperm.xlu0 %295, %v278
        %v297 = vpop.permute.xlu0 %296
        %300 = vset.pattern.permute.xlu0 0
        %301 = vperm.xlu0 %300, %v279
        %v302 = vpop.permute.xlu0 %301
        %305 = vset.pattern.permute.xlu0 0
        %306 = vperm.xlu0 %305, %v280
        %v307 = vpop.permute.xlu0 %306
        %310 = vset.pattern.permute.xlu0 0
        %311 = vperm.xlu0 %310, %v281
        %v312 = vpop.permute.xlu0 %311
        %315 = vset.pattern.permute.xlu0 0
        %316 = vperm.xlu0 %315, %v282
        %v317 = vpop.permute.xlu0 %316
        %320 = vset.pattern.permute.xlu0 0
        %321 = vperm.xlu0 %320, %v283
        %v322 = vpop.permute.xlu0 %321
        %325 = vset.pattern.permute.xlu0 0
        %326 = vperm.xlu0 %325, %v284
        %v327 = vpop.permute.xlu0 %326
        %330 = vset.pattern.permute.xlu0 0
        %331 = vperm.xlu0 %330, %v285
        %v332 = vpop.permute.xlu0 %331
        %v335 = vlaneseq
        %v336 = vshrl.u32 %v335, 7
        %v337 = vsub.s32 0, %v336
        %v338 = vrot.slane %v277, %v337
        %v339 = vlaneseq
        %v340 = vshrl.u32 %v339, 7
        %v341 = vsub.s32 1, %v340
        %v342 = vrot.slane %v277, %v341
        %v343 = vlaneseq
        %v344 = vshrl.u32 %v343, 7
        %v345 = vsub.s32 2, %v344
        %v346 = vrot.slane %v277, %v345
        %v347 = vlaneseq
        %v348 = vshrl.u32 %v347, 7
        %v349 = vsub.s32 3, %v348
        %v350 = vrot.slane %v277, %v349
        %v351 = vlaneseq
        %v352 = vshrl.u32 %v351, 7
        %v353 = vsub.s32 4, %v352
        %v354 = vrot.slane %v277, %v353
        %v355 = vlaneseq
        %v356 = vshrl.u32 %v355, 7
        %v357 = vsub.s32 5, %v356
        %v358 = vrot.slane %v277, %v357
        %v359 = vlaneseq
        %v360 = vshrl.u32 %v359, 7
        %v361 = vsub.s32 6, %v360
        %v362 = vrot.slane %v277, %v361
        %v363 = vlaneseq
        %v364 = vshrl.u32 %v363, 7
        %v365 = vsub.s32 7, %v364
        %v366 = vrot.slane %v277, %v365
        %v375 = vmul.f32 %v297, %v338
        %v376 = vmul.f32 %v297, %v342
        %v377 = vmul.f32 %v297, %v346
        %v378 = vmul.f32 %v297, %v350
        %v379 = vmul.f32 %v297, %v354
        %v380 = vmul.f32 %v297, %v358
        %v381 = vmul.f32 %v297, %v362
        %v382 = vmul.f32 %v297, %v366
        %v383 = vmul.f32 %v302, %v338
        %v384 = vmul.f32 %v302, %v342
        %v385 = vmul.f32 %v302, %v346
        %v386 = vmul.f32 %v302, %v350
        %v387 = vmul.f32 %v302, %v354
        %v388 = vmul.f32 %v302, %v358
        %v389 = vmul.f32 %v302, %v362
        %v390 = vmul.f32 %v302, %v366
        %v391 = vmul.f32 %v307, %v338
        %v392 = vmul.f32 %v307, %v342
        %v393 = vmul.f32 %v307, %v346
        %v394 = vmul.f32 %v307, %v350
        %v395 = vmul.f32 %v307, %v354
        %v396 = vmul.f32 %v307, %v358
        %v397 = vmul.f32 %v307, %v362
        %v398 = vmul.f32 %v307, %v366
        %v399 = vmul.f32 %v312, %v338
        %v400 = vmul.f32 %v312, %v342
        %v401 = vmul.f32 %v312, %v346
        %v402 = vmul.f32 %v312, %v350
        %v403 = vmul.f32 %v312, %v354
        %v404 = vmul.f32 %v312, %v358
        %v405 = vmul.f32 %v312, %v362
        %v406 = vmul.f32 %v312, %v366
        %v407 = vmul.f32 %v317, %v338
        %v408 = vmul.f32 %v317, %v342
        %v409 = vmul.f32 %v317, %v346
        %v410 = vmul.f32 %v317, %v350
        %v411 = vmul.f32 %v317, %v354
        %v412 = vmul.f32 %v317, %v358
        %v413 = vmul.f32 %v317, %v362
        %v414 = vmul.f32 %v317, %v366
        %v415 = vmul.f32 %v322, %v338
        %v416 = vmul.f32 %v322, %v342
        %v417 = vmul.f32 %v322, %v346
        %v418 = vmul.f32 %v322, %v350
        %v419 = vmul.f32 %v322, %v354
        %v420 = vmul.f32 %v322, %v358
        %v421 = vmul.f32 %v322, %v362
        %v422 = vmul.f32 %v322, %v366
        %v423 = vmul.f32 %v327, %v338
        %v424 = vmul.f32 %v327, %v342
        %v425 = vmul.f32 %v327, %v346
        %v426 = vmul.f32 %v327, %v350
        %v427 = vmul.f32 %v327, %v354
        %v428 = vmul.f32 %v327, %v358
        %v429 = vmul.f32 %v327, %v362
        %v430 = vmul.f32 %v327, %v366
        %v431 = vmul.f32 %v332, %v338
        %v432 = vmul.f32 %v332, %v342
        %v433 = vmul.f32 %v332, %v346
        %v434 = vmul.f32 %v332, %v350
        %v435 = vmul.f32 %v332, %v354
        %v436 = vmul.f32 %v332, %v358
        %v437 = vmul.f32 %v332, %v362
        %v438 = vmul.f32 %v332, %v366
        %440 = vset.pattern.permute.xlu0 0
        %441 = vperm.xlu0 %440, %v286
        %v442 = vpop.permute.xlu0 %441
        %445 = vset.pattern.permute.xlu0 0
        %446 = vperm.xlu0 %445, %v287
        %v447 = vpop.permute.xlu0 %446
        %450 = vset.pattern.permute.xlu0 0
        %451 = vperm.xlu0 %450, %v288
        %v452 = vpop.permute.xlu0 %451
        %455 = vset.pattern.permute.xlu0 0
        %456 = vperm.xlu0 %455, %v289
        %v457 = vpop.permute.xlu0 %456
        %460 = vset.pattern.permute.xlu0 0
        %461 = vperm.xlu0 %460, %v290
        %v462 = vpop.permute.xlu0 %461
        %465 = vset.pattern.permute.xlu0 0
        %466 = vperm.xlu0 %465, %v291
        %v467 = vpop.permute.xlu0 %466
        %470 = vset.pattern.permute.xlu0 0
        %471 = vperm.xlu0 %470, %v292
        %v472 = vpop.permute.xlu0 %471
        %475 = vset.pattern.permute.xlu0 0
        %476 = vperm.xlu0 %475, %v293
        %v477 = vpop.permute.xlu0 %476
        %v479 = vadd.f32 %v375, %v442
        %v480 = vadd.f32 %v376, %v442
        %v481 = vadd.f32 %v377, %v442
        %v482 = vadd.f32 %v378, %v442
        %v483 = vadd.f32 %v379, %v442
        %v484 = vadd.f32 %v380, %v442
        %v485 = vadd.f32 %v381, %v442
        %v486 = vadd.f32 %v382, %v442
        %v487 = vadd.f32 %v383, %v447
        %v488 = vadd.f32 %v384, %v447
        %v489 = vadd.f32 %v385, %v447
        %v490 = vadd.f32 %v386, %v447
        %v491 = vadd.f32 %v387, %v447
        %v492 = vadd.f32 %v388, %v447
        %v493 = vadd.f32 %v389, %v447
        %v494 = vadd.f32 %v390, %v447
        %v495 = vadd.f32 %v391, %v452
        %v496 = vadd.f32 %v392, %v452
        %v497 = vadd.f32 %v393, %v452
        %v498 = vadd.f32 %v394, %v452
        %v499 = vadd.f32 %v395, %v452
        %v500 = vadd.f32 %v396, %v452
        %v501 = vadd.f32 %v397, %v452
        %v502 = vadd.f32 %v398, %v452
        %v503 = vadd.f32 %v399, %v457
        %v504 = vadd.f32 %v400, %v457
        %v505 = vadd.f32 %v401, %v457
        %v506 = vadd.f32 %v402, %v457
        %v507 = vadd.f32 %v403, %v457
        %v508 = vadd.f32 %v404, %v457
        %v509 = vadd.f32 %v405, %v457
        %v510 = vadd.f32 %v406, %v457
        %v511 = vadd.f32 %v407, %v462
        %v512 = vadd.f32 %v408, %v462
        %v513 = vadd.f32 %v409, %v462
        %v514 = vadd.f32 %v410, %v462
        %v515 = vadd.f32 %v411, %v462
        %v516 = vadd.f32 %v412, %v462
        %v517 = vadd.f32 %v413, %v462
        %v518 = vadd.f32 %v414, %v462
        %v519 = vadd.f32 %v415, %v467
        %v520 = vadd.f32 %v416, %v467
        %v521 = vadd.f32 %v417, %v467
        %v522 = vadd.f32 %v418, %v467
        %v523 = vadd.f32 %v419, %v467
        %v524 = vadd.f32 %v420, %v467
        %v525 = vadd.f32 %v421, %v467
        %v526 = vadd.f32 %v422, %v467
        %v527 = vadd.f32 %v423, %v472
        %v528 = vadd.f32 %v424, %v472
        %v529 = vadd.f32 %v425, %v472
        %v530 = vadd.f32 %v426, %v472
        %v531 = vadd.f32 %v427, %v472
        %v532 = vadd.f32 %v428, %v472
        %v533 = vadd.f32 %v429, %v472
        %v534 = vadd.f32 %v430, %v472
        %v535 = vadd.f32 %v431, %v477
        %v536 = vadd.f32 %v432, %v477
        %v537 = vadd.f32 %v433, %v477
        %v538 = vadd.f32 %v434, %v477
        %v539 = vadd.f32 %v435, %v477
        %v540 = vadd.f32 %v436, %v477
        %v541 = vadd.f32 %v437, %v477
        %v542 = vadd.f32 %v438, %v477
        %v543 = vtanh.pop %v479
        %v544 = vtanh.pop %v480
        %v545 = vtanh.pop %v481
        %v546 = vtanh.pop %v482
        %v547 = vtanh.pop %v483
        %v548 = vtanh.pop %v484
        %v549 = vtanh.pop %v485
        %v550 = vtanh.pop %v486
        %v551 = vtanh.pop %v487
        %v552 = vtanh.pop %v488
        %v553 = vtanh.pop %v489
        %v554 = vtanh.pop %v490
        %v555 = vtanh.pop %v491
        %v556 = vtanh.pop %v492
        %v557 = vtanh.pop %v493
        %v558 = vtanh.pop %v494
        %v559 = vtanh.pop %v495
        %v560 = vtanh.pop %v496
        %v561 = vtanh.pop %v497
        %v562 = vtanh.pop %v498
        %v563 = vtanh.pop %v499
        %v564 = vtanh.pop %v500
        %v565 = vtanh.pop %v501
        %v566 = vtanh.pop %v502
        %v567 = vtanh.pop %v503
        %v568 = vtanh.pop %v504
        %v569 = vtanh.pop %v505
        %v570 = vtanh.pop %v506
        %v571 = vtanh.pop %v507
        %v572 = vtanh.pop %v508
        %v573 = vtanh.pop %v509
        %v574 = vtanh.pop %v510
        %v575 = vtanh.pop %v511
        %v576 = vtanh.pop %v512
        %v577 = vtanh.pop %v513
        %v578 = vtanh.pop %v514
        %v579 = vtanh.pop %v515
        %v580 = vtanh.pop %v516
        %v581 = vtanh.pop %v517
        %v582 = vtanh.pop %v518
        %v583 = vtanh.pop %v519
        %v584 = vtanh.pop %v520
        %v585 = vtanh.pop %v521
        %v586 = vtanh.pop %v522
        %v587 = vtanh.pop %v523
        %v588 = vtanh.pop %v524
        %v589 = vtanh.pop %v525
        %v590 = vtanh.pop %v526
        %v591 = vtanh.pop %v527
        %v592 = vtanh.pop %v528
        %v593 = vtanh.pop %v529
        %v594 = vtanh.pop %v530
        %v595 = vtanh.pop %v531
        %v596 = vtanh.pop %v532
        %v597 = vtanh.pop %v533
        %v598 = vtanh.pop %v534
        %v599 = vtanh.pop %v535
        %v600 = vtanh.pop %v536
        %v601 = vtanh.pop %v537
        %v602 = vtanh.pop %v538
        %v603 = vtanh.pop %v539
        %v604 = vtanh.pop %v540
        %v605 = vtanh.pop %v541
        %v606 = vtanh.pop %v542
        %v607 = vld [vmem:[%s3] sm:$0xff]
        %v608 = vld [vmem:[%s3 + $0x8] sm:$0xff]
        %v609 = vld [vmem:[%s3 + $0x10] sm:$0xff]
        %v610 = vld [vmem:[%s3 + $0x18] sm:$0xff]
        %v611 = vld [vmem:[%s3 + $0x20] sm:$0xff]
        %v612 = vld [vmem:[%s3 + $0x28] sm:$0xff]
        %v613 = vld [vmem:[%s3 + $0x30] sm:$0xff]
        %v614 = vld [vmem:[%s3 + $0x38] sm:$0xff]
        %v615 = vld [vmem:[%s4] sm:$0xff]
        %v616 = vld [vmem:[%s4 + $0x8] sm:$0xff]
        %v617 = vld [vmem:[%s4 + $0x10] sm:$0xff]
        %v618 = vld [vmem:[%s4 + $0x18] sm:$0xff]
        %v619 = vld [vmem:[%s4 + $0x20] sm:$0xff]
        %v620 = vld [vmem:[%s4 + $0x28] sm:$0xff]
        %v621 = vld [vmem:[%s4 + $0x30] sm:$0xff]
        %v622 = vld [vmem:[%s4 + $0x38] sm:$0xff]
        %624 = vset.pattern.permute.xlu0 0
        %625 = vperm.xlu0 %624, %v615
        %v626 = vpop.permute.xlu0 %625
        %629 = vset.pattern.permute.xlu0 0
        %630 = vperm.xlu0 %629, %v616
        %v631 = vpop.permute.xlu0 %630
        %634 = vset.pattern.permute.xlu0 0
        %635 = vperm.xlu0 %634, %v617
        %v636 = vpop.permute.xlu0 %635
        %639 = vset.pattern.permute.xlu0 0
        %640 = vperm.xlu0 %639, %v618
        %v641 = vpop.permute.xlu0 %640
        %644 = vset.pattern.permute.xlu0 0
        %645 = vperm.xlu0 %644, %v619
        %v646 = vpop.permute.xlu0 %645
        %649 = vset.pattern.permute.xlu0 0
        %650 = vperm.xlu0 %649, %v620
        %v651 = vpop.permute.xlu0 %650
        %654 = vset.pattern.permute.xlu0 0
        %655 = vperm.xlu0 %654, %v621
        %v656 = vpop.permute.xlu0 %655
        %659 = vset.pattern.permute.xlu0 0
        %660 = vperm.xlu0 %659, %v622
        %v661 = vpop.permute.xlu0 %660
        %vm663 = vcmask 523264
        %v665 = vsel %vm663, %v607, 0
        %v668 = vsel %vm663, %v608, 0
        %v671 = vsel %vm663, %v609, 0
        %v674 = vsel %vm663, %v610, 0
        %v677 = vsel %vm663, %v611, 0
        %v680 = vsel %vm663, %v612, 0
        %v683 = vsel %vm663, %v613, 0
        %v686 = vsel %vm663, %v614, 0
        %688 = vmatprep.subr.mxu0 0.0
        %689 = vmatpush1.msra.mxu0 0.0
        %690 = vmatprep.subr.mxu0 0.0
        %691 = vmatpush1.msra.mxu0 0.0
        %692 = vmatprep.subr.mxu0 0.0
        %693 = vmatpush1.msra.mxu0 0.0
        %694 = vmatprep.subr.mxu0 0.0
        %695 = vmatpush1.msra.mxu0 0.0
        %696 = vmatprep.subr.mxu0 0.0
        %697 = vmatpush1.msra.mxu0 0.0
        %698 = vmatprep.subr.mxu0 0.0
        %699 = vmatpush1.msra.mxu0 0.0
        %700 = vmatprep.subr.mxu0 0.0
        %701 = vmatpush1.msra.mxu0 0.0
        %702 = vmatprep.subr.mxu0 0.0
        %703 = vmatpush1.msra.mxu0 0.0
        %704 = vmatprep.subr.mxu0 %v600
        %705 = vmatpush1.msra.mxu0 %v599
        %706 = vmatprep.subr.mxu0 %v592
        %707 = vmatpush1.msra.mxu0 %v591
        %708 = vmatprep.subr.mxu0 %v584
        %709 = vmatpush1.msra.mxu0 %v583
        %710 = vmatprep.subr.mxu0 %v576
        %711 = vmatpush1.msra.mxu0 %v575
        %712 = vmatprep.subr.mxu0 %v568
        %713 = vmatpush1.msra.mxu0 %v567
        %714 = vmatprep.subr.mxu0 %v560
        %715 = vmatpush1.msra.mxu0 %v559
        %716 = vmatprep.subr.mxu0 %v552
        %717 = vmatpush1.msra.mxu0 %v551
        %718 = vmatprep.subr.mxu0 %v544
        %719 = vmatpush1.msra.mxu0 %v543
        %720 = vmatprep.subr.mxu0 0.0
        %721 = vmatpush2.msra.mxu0 0.0
        %722 = vmatprep.subr.mxu0 0.0
        %723 = vmatpush2.msra.mxu0 0.0
        %724 = vmatprep.subr.mxu0 0.0
        %725 = vmatpush2.msra.mxu0 0.0
        %726 = vmatprep.subr.mxu0 0.0
        %727 = vmatpush2.msra.mxu0 0.0
        %728 = vmatprep.subr.mxu0 0.0
        %729 = vmatpush2.msra.mxu0 0.0
        %730 = vmatprep.subr.mxu0 0.0
        %731 = vmatpush2.msra.mxu0 0.0
        %732 = vmatprep.subr.mxu0 0.0
        %733 = vmatpush2.msra.mxu0 0.0
        %734 = vmatprep.subr.mxu0 0.0
        %735 = vmatpush2.msra.mxu0 0.0
        %736 = vmatprep.subr.mxu0 0.0
        %737 = vmatpush2.msra.mxu0 0.0
        %738 = vmatprep.subr.mxu0 0.0
        %739 = vmatpush2.msra.mxu0 0.0
        %740 = vmatprep.subr.mxu0 0.0
        %741 = vmatpush2.msra.mxu0 0.0
        %742 = vmatprep.subr.mxu0 0.0
        %743 = vmatpush2.msra.mxu0 0.0
        %744 = vmatprep.subr.mxu0 0.0
        %745 = vmatpush2.msra.mxu0 0.0
        %746 = vmatprep.subr.mxu0 0.0
        %747 = vmatpush2.msra.mxu0 0.0
        %748 = vmatprep.subr.mxu0 0.0
        %749 = vmatpush2.msra.mxu0 0.0
        %750 = vmatprep.subr.mxu0 0.0
        %751 = vmatpush2.msra.mxu0 0.0
        %752 = vmatprep.mubr.f32.mxu0 0.0
        %753 = vmatmul.mubr.f32.gmra.mxu0 %v665
        %v754 = vpop.f32.mrf.mxu0
        %v755 = vadd.f32 %v626, %v754
        %v756 = vpop.f32.mrf.mxu0
        %v757 = vadd.f32 %v626, %v756
        %758 = vmatprep.mubr.f32.mxu0 0.0
        %759 = vmatmul.mubr.f32.gmra.mxu0 %v668
        %v760 = vpop.f32.mrf.mxu0
        %v761 = vadd.f32 %v631, %v760
        %v762 = vpop.f32.mrf.mxu0
        %v763 = vadd.f32 %v631, %v762
        %764 = vmatprep.mubr.f32.mxu0 0.0
        %765 = vmatmul.mubr.f32.gmra.mxu0 %v671
        %v766 = vpop.f32.mrf.mxu0
        %v767 = vadd.f32 %v636, %v766
        %v768 = vpop.f32.mrf.mxu0
        %v769 = vadd.f32 %v636, %v768
        %770 = vmatprep.mubr.f32.mxu0 0.0
        %771 = vmatmul.mubr.f32.gmra.mxu0 %v674
        %v772 = vpop.f32.mrf.mxu0
        %v773 = vadd.f32 %v641, %v772
        %v774 = vpop.f32.mrf.mxu0
        %v775 = vadd.f32 %v641, %v774
        %776 = vmatprep.mubr.f32.mxu0 0.0
        %777 = vmatmul.mubr.f32.gmra.mxu0 %v677
        %v778 = vpop.f32.mrf.mxu0
        %v779 = vadd.f32 %v646, %v778
        %v780 = vpop.f32.mrf.mxu0
        %v781 = vadd.f32 %v646, %v780
        %782 = vmatprep.mubr.f32.mxu0 0.0
        %783 = vmatmul.mubr.f32.gmra.mxu0 %v680
        %v784 = vpop.f32.mrf.mxu0
        %v785 = vadd.f32 %v651, %v784
        %v786 = vpop.f32.mrf.mxu0
        %v787 = vadd.f32 %v651, %v786
        %788 = vmatprep.mubr.f32.mxu0 0.0
        %789 = vmatmul.mubr.f32.gmra.mxu0 %v683
        %v790 = vpop.f32.mrf.mxu0
        %v791 = vadd.f32 %v656, %v790
        %v792 = vpop.f32.mrf.mxu0
        %v793 = vadd.f32 %v656, %v792
        %794 = vmatprep.mubr.f32.mxu0 0.0
        %795 = vmatmul.mubr.f32.gmra.mxu0 %v686
        %v796 = vpop.f32.mrf.mxu0
        %v797 = vadd.f32 %v661, %v796
        %v798 = vpop.f32.mrf.mxu0
        %v799 = vadd.f32 %v661, %v798
        %800 = vdwg.mxu0
        %801 = vmatprep.subr.mxu0 0.0
        %802 = vmatpush1.msra.mxu0 0.0
        %803 = vmatprep.subr.mxu0 0.0
        %804 = vmatpush1.msra.mxu0 0.0
        %805 = vmatprep.subr.mxu0 0.0
        %806 = vmatpush1.msra.mxu0 0.0
        %807 = vmatprep.subr.mxu0 0.0
        %808 = vmatpush1.msra.mxu0 0.0
        %809 = vmatprep.subr.mxu0 0.0
        %810 = vmatpush1.msra.mxu0 0.0
        %811 = vmatprep.subr.mxu0 0.0
        %812 = vmatpush1.msra.mxu0 0.0
        %813 = vmatprep.subr.mxu0 0.0
        %814 = vmatpush1.msra.mxu0 0.0
        %815 = vmatprep.subr.mxu0 0.0
        %816 = vmatpush1.msra.mxu0 0.0
        %817 = vmatprep.subr.mxu0 %v602
        %818 = vmatpush1.msra.mxu0 %v601
        %819 = vmatprep.subr.mxu0 %v594
        %820 = vmatpush1.msra.mxu0 %v593
        %821 = vmatprep.subr.mxu0 %v586
        %822 = vmatpush1.msra.mxu0 %v585
        %823 = vmatprep.subr.mxu0 %v578
        %824 = vmatpush1.msra.mxu0 %v577
        %825 = vmatprep.subr.mxu0 %v570
        %826 = vmatpush1.msra.mxu0 %v569
        %827 = vmatprep.subr.mxu0 %v562
        %828 = vmatpush1.msra.mxu0 %v561
        %829 = vmatprep.subr.mxu0 %v554
        %830 = vmatpush1.msra.mxu0 %v553
        %831 = vmatprep.subr.mxu0 %v546
        %832 = vmatpush1.msra.mxu0 %v545
        %833 = vmatprep.subr.mxu0 0.0
        %834 = vmatpush2.msra.mxu0 0.0
        %835 = vmatprep.subr.mxu0 0.0
        %836 = vmatpush2.msra.mxu0 0.0
        %837 = vmatprep.subr.mxu0 0.0
        %838 = vmatpush2.msra.mxu0 0.0
        %839 = vmatprep.subr.mxu0 0.0
        %840 = vmatpush2.msra.mxu0 0.0
        %841 = vmatprep.subr.mxu0 0.0
        %842 = vmatpush2.msra.mxu0 0.0
        %843 = vmatprep.subr.mxu0 0.0
        %844 = vmatpush2.msra.mxu0 0.0
        %845 = vmatprep.subr.mxu0 0.0
        %846 = vmatpush2.msra.mxu0 0.0
        %847 = vmatprep.subr.mxu0 0.0
        %848 = vmatpush2.msra.mxu0 0.0
        %849 = vmatprep.subr.mxu0 0.0
        %850 = vmatpush2.msra.mxu0 0.0
        %851 = vmatprep.subr.mxu0 0.0
        %852 = vmatpush2.msra.mxu0 0.0
        %853 = vmatprep.subr.mxu0 0.0
        %854 = vmatpush2.msra.mxu0 0.0
        %855 = vmatprep.subr.mxu0 0.0
        %856 = vmatpush2.msra.mxu0 0.0
        %857 = vmatprep.subr.mxu0 0.0
        %858 = vmatpush2.msra.mxu0 0.0
        %859 = vmatprep.subr.mxu0 0.0
        %860 = vmatpush2.msra.mxu0 0.0
        %861 = vmatprep.subr.mxu0 0.0
        %862 = vmatpush2.msra.mxu0 0.0
        %863 = vmatprep.subr.mxu0 0.0
        %864 = vmatpush2.msra.mxu0 0.0
        %865 = vmatprep.mubr.f32.mxu0 0.0
        %866 = vmatmul.mubr.f32.gmra.mxu0 %v665
        %v867 = vpop.f32.mrf.mxu0
        %v868 = vadd.f32 %v626, %v867
        %v869 = vpop.f32.mrf.mxu0
        %v870 = vadd.f32 %v626, %v869
        %871 = vmatprep.mubr.f32.mxu0 0.0
        %872 = vmatmul.mubr.f32.gmra.mxu0 %v668
        %v873 = vpop.f32.mrf.mxu0
        %v874 = vadd.f32 %v631, %v873
        %v875 = vpop.f32.mrf.mxu0
        %v876 = vadd.f32 %v631, %v875
        %877 = vmatprep.mubr.f32.mxu0 0.0
        %878 = vmatmul.mubr.f32.gmra.mxu0 %v671
        %v879 = vpop.f32.mrf.mxu0
        %v880 = vadd.f32 %v636, %v879
        %v881 = vpop.f32.mrf.mxu0
        %v882 = vadd.f32 %v636, %v881
        %883 = vmatprep.mubr.f32.mxu0 0.0
        %884 = vmatmul.mubr.f32.gmra.mxu0 %v674
        %v885 = vpop.f32.mrf.mxu0
        %v886 = vadd.f32 %v641, %v885
        %v887 = vpop.f32.mrf.mxu0
        %v888 = vadd.f32 %v641, %v887
        %889 = vmatprep.mubr.f32.mxu0 0.0
        %890 = vmatmul.mubr.f32.gmra.mxu0 %v677
        %v891 = vpop.f32.mrf.mxu0
        %v892 = vadd.f32 %v646, %v891
        %v893 = vpop.f32.mrf.mxu0
        %v894 = vadd.f32 %v646, %v893
        %895 = vmatprep.mubr.f32.mxu0 0.0
        %896 = vmatmul.mubr.f32.gmra.mxu0 %v680
        %v897 = vpop.f32.mrf.mxu0
        %v898 = vadd.f32 %v651, %v897
        %v899 = vpop.f32.mrf.mxu0
        %v900 = vadd.f32 %v651, %v899
        %901 = vmatprep.mubr.f32.mxu0 0.0
        %902 = vmatmul.mubr.f32.gmra.mxu0 %v683
        %v903 = vpop.f32.mrf.mxu0
        %v904 = vadd.f32 %v656, %v903
        %v905 = vpop.f32.mrf.mxu0
        %v906 = vadd.f32 %v656, %v905
        %907 = vmatprep.mubr.f32.mxu0 0.0
        %908 = vmatmul.mubr.f32.gmra.mxu0 %v686
        %v909 = vpop.f32.mrf.mxu0
        %v910 = vadd.f32 %v661, %v909
        %v911 = vpop.f32.mrf.mxu0
        %v912 = vadd.f32 %v661, %v911
        %913 = vdwg.mxu0
        %914 = vmatprep.subr.mxu0 0.0
        %915 = vmatpush1.msra.mxu0 0.0
        %916 = vmatprep.subr.mxu0 0.0
        %917 = vmatpush1.msra.mxu0 0.0
        %918 = vmatprep.subr.mxu0 0.0
        %919 = vmatpush1.msra.mxu0 0.0
        %920 = vmatprep.subr.mxu0 0.0
        %921 = vmatpush1.msra.mxu0 0.0
        %922 = vmatprep.subr.mxu0 0.0
        %923 = vmatpush1.msra.mxu0 0.0
        %924 = vmatprep.subr.mxu0 0.0
        %925 = vmatpush1.msra.mxu0 0.0
        %926 = vmatprep.subr.mxu0 0.0
        %927 = vmatpush1.msra.mxu0 0.0
        %928 = vmatprep.subr.mxu0 0.0
        %929 = vmatpush1.msra.mxu0 0.0
        %930 = vmatprep.subr.mxu0 %v604
        %931 = vmatpush1.msra.mxu0 %v603
        %932 = vmatprep.subr.mxu0 %v596
        %933 = vmatpush1.msra.mxu0 %v595
        %934 = vmatprep.subr.mxu0 %v588
        %935 = vmatpush1.msra.mxu0 %v587
        %936 = vmatprep.subr.mxu0 %v580
        %937 = vmatpush1.msra.mxu0 %v579
        %938 = vmatprep.subr.mxu0 %v572
        %939 = vmatpush1.msra.mxu0 %v571
        %940 = vmatprep.subr.mxu0 %v564
        %941 = vmatpush1.msra.mxu0 %v563
        %942 = vmatprep.subr.mxu0 %v556
        %943 = vmatpush1.msra.mxu0 %v555
        %944 = vmatprep.subr.mxu0 %v548
        %945 = vmatpush1.msra.mxu0 %v547
        %946 = vmatprep.subr.mxu0 0.0
        %947 = vmatpush2.msra.mxu0 0.0
        %948 = vmatprep.subr.mxu0 0.0
        %949 = vmatpush2.msra.mxu0 0.0
        %950 = vmatprep.subr.mxu0 0.0
        %951 = vmatpush2.msra.mxu0 0.0
        %952 = vmatprep.subr.mxu0 0.0
        %953 = vmatpush2.msra.mxu0 0.0
        %954 = vmatprep.subr.mxu0 0.0
        %955 = vmatpush2.msra.mxu0 0.0
        %956 = vmatprep.subr.mxu0 0.0
        %957 = vmatpush2.msra.mxu0 0.0
        %958 = vmatprep.subr.mxu0 0.0
        %959 = vmatpush2.msra.mxu0 0.0
        %960 = vmatprep.subr.mxu0 0.0
        %961 = vmatpush2.msra.mxu0 0.0
        %962 = vmatprep.subr.mxu0 0.0
        %963 = vmatpush2.msra.mxu0 0.0
        %964 = vmatprep.subr.mxu0 0.0
        %965 = vmatpush2.msra.mxu0 0.0
        %966 = vmatprep.subr.mxu0 0.0
        %967 = vmatpush2.msra.mxu0 0.0
        %968 = vmatprep.subr.mxu0 0.0
        %969 = vmatpush2.msra.mxu0 0.0
        %970 = vmatprep.subr.mxu0 0.0
        %971 = vmatpush2.msra.mxu0 0.0
        %972 = vmatprep.subr.mxu0 0.0
        %973 = vmatpush2.msra.mxu0 0.0
        %974 = vmatprep.subr.mxu0 0.0
        %975 = vmatpush2.msra.mxu0 0.0
        %976 = vmatprep.subr.mxu0 0.0
        %977 = vmatpush2.msra.mxu0 0.0
        %978 = vmatprep.mubr.f32.mxu0 0.0
        %979 = vmatmul.mubr.f32.gmra.mxu0 %v665
        %v980 = vpop.f32.mrf.mxu0
        %v981 = vadd.f32 %v626, %v980
        %v982 = vpop.f32.mrf.mxu0
        %v983 = vadd.f32 %v626, %v982
        %984 = vmatprep.mubr.f32.mxu0 0.0
        %985 = vmatmul.mubr.f32.gmra.mxu0 %v668
        %v986 = vpop.f32.mrf.mxu0
        %v987 = vadd.f32 %v631, %v986
        %v988 = vpop.f32.mrf.mxu0
        %v989 = vadd.f32 %v631, %v988
        %990 = vmatprep.mubr.f32.mxu0 0.0
        %991 = vmatmul.mubr.f32.gmra.mxu0 %v671
        %v992 = vpop.f32.mrf.mxu0
        %v993 = vadd.f32 %v636, %v992
        %v994 = vpop.f32.mrf.mxu0
        %v995 = vadd.f32 %v636, %v994
        %996 = vmatprep.mubr.f32.mxu0 0.0
        %997 = vmatmul.mubr.f32.gmra.mxu0 %v674
        %v998 = vpop.f32.mrf.mxu0
        %v999 = vadd.f32 %v641, %v998
        %v1000 = vpop.f32.mrf.mxu0
        %v1001 = vadd.f32 %v641, %v1000
        %1002 = vmatprep.mubr.f32.mxu0 0.0
        %1003 = vmatmul.mubr.f32.gmra.mxu0 %v677
        %v1004 = vpop.f32.mrf.mxu0
        %v1005 = vadd.f32 %v646, %v1004
        %v1006 = vpop.f32.mrf.mxu0
        %v1007 = vadd.f32 %v646, %v1006
        %1008 = vmatprep.mubr.f32.mxu0 0.0
        %1009 = vmatmul.mubr.f32.gmra.mxu0 %v680
        %v1010 = vpop.f32.mrf.mxu0
        %v1011 = vadd.f32 %v651, %v1010
        %v1012 = vpop.f32.mrf.mxu0
        %v1013 = vadd.f32 %v651, %v1012
        %1014 = vmatprep.mubr.f32.mxu0 0.0
        %1015 = vmatmul.mubr.f32.gmra.mxu0 %v683
        %v1016 = vpop.f32.mrf.mxu0
        %v1017 = vadd.f32 %v656, %v1016
        %v1018 = vpop.f32.mrf.mxu0
        %v1019 = vadd.f32 %v656, %v1018
        %1020 = vmatprep.mubr.f32.mxu0 0.0
        %1021 = vmatmul.mubr.f32.gmra.mxu0 %v686
        %v1022 = vpop.f32.mrf.mxu0
        %v1023 = vadd.f32 %v661, %v1022
        %v1024 = vpop.f32.mrf.mxu0
        %v1025 = vadd.f32 %v661, %v1024
        %1026 = vdwg.mxu0
        %1027 = vmatprep.subr.mxu0 0.0
        %1028 = vmatpush1.msra.mxu0 0.0
        %1029 = vmatprep.subr.mxu0 0.0
        %1030 = vmatpush1.msra.mxu0 0.0
        %1031 = vmatprep.subr.mxu0 0.0
        %1032 = vmatpush1.msra.mxu0 0.0
        %1033 = vmatprep.subr.mxu0 0.0
        %1034 = vmatpush1.msra.mxu0 0.0
        %1035 = vmatprep.subr.mxu0 0.0
        %1036 = vmatpush1.msra.mxu0 0.0
        %1037 = vmatprep.subr.mxu0 0.0
        %1038 = vmatpush1.msra.mxu0 0.0
        %1039 = vmatprep.subr.mxu0 0.0
        %1040 = vmatpush1.msra.mxu0 0.0
        %1041 = vmatprep.subr.mxu0 0.0
        %1042 = vmatpush1.msra.mxu0 0.0
        %1043 = vmatprep.subr.mxu0 %v606
        %1044 = vmatpush1.msra.mxu0 %v605
        %1045 = vmatprep.subr.mxu0 %v598
        %1046 = vmatpush1.msra.mxu0 %v597
        %1047 = vmatprep.subr.mxu0 %v590
        %1048 = vmatpush1.msra.mxu0 %v589
        %1049 = vmatprep.subr.mxu0 %v582
        %1050 = vmatpush1.msra.mxu0 %v581
        %1051 = vmatprep.subr.mxu0 %v574
        %1052 = vmatpush1.msra.mxu0 %v573
        %1053 = vmatprep.subr.mxu0 %v566
        %1054 = vmatpush1.msra.mxu0 %v565
        %1055 = vmatprep.subr.mxu0 %v558
        %1056 = vmatpush1.msra.mxu0 %v557
        %1057 = vmatprep.subr.mxu0 %v550
        %1058 = vmatpush1.msra.mxu0 %v549
        %1059 = vmatprep.subr.mxu0 0.0
        %1060 = vmatpush2.msra.mxu0 0.0
        %1061 = vmatprep.subr.mxu0 0.0
        %1062 = vmatpush2.msra.mxu0 0.0
        %1063 = vmatprep.subr.mxu0 0.0
        %1064 = vmatpush2.msra.mxu0 0.0
        %1065 = vmatprep.subr.mxu0 0.0
        %1066 = vmatpush2.msra.mxu0 0.0
        %1067 = vmatprep.subr.mxu0 0.0
        %1068 = vmatpush2.msra.mxu0 0.0
        %1069 = vmatprep.subr.mxu0 0.0
        %1070 = vmatpush2.msra.mxu0 0.0
        %1071 = vmatprep.subr.mxu0 0.0
        %1072 = vmatpush2.msra.mxu0 0.0
        %1073 = vmatprep.subr.mxu0 0.0
        %1074 = vmatpush2.msra.mxu0 0.0
        %1075 = vmatprep.subr.mxu0 0.0
        %1076 = vmatpush2.msra.mxu0 0.0
        %1077 = vmatprep.subr.mxu0 0.0
        %1078 = vmatpush2.msra.mxu0 0.0
        %1079 = vmatprep.subr.mxu0 0.0
        %1080 = vmatpush2.msra.mxu0 0.0
        %1081 = vmatprep.subr.mxu0 0.0
        %1082 = vmatpush2.msra.mxu0 0.0
        %1083 = vmatprep.subr.mxu0 0.0
        %1084 = vmatpush2.msra.mxu0 0.0
        %1085 = vmatprep.subr.mxu0 0.0
        %1086 = vmatpush2.msra.mxu0 0.0
        %1087 = vmatprep.subr.mxu0 0.0
        %1088 = vmatpush2.msra.mxu0 0.0
        %1089 = vmatprep.subr.mxu0 0.0
        %1090 = vmatpush2.msra.mxu0 0.0
        %1091 = vmatprep.mubr.f32.mxu0 0.0
        %1092 = vmatmul.mubr.f32.gmra.mxu0 %v665
        %v1093 = vpop.f32.mrf.mxu0
        %v1094 = vadd.f32 %v626, %v1093
        %v1095 = vpop.f32.mrf.mxu0
        %v1096 = vadd.f32 %v626, %v1095
        %1097 = vmatprep.mubr.f32.mxu0 0.0
        %1098 = vmatmul.mubr.f32.gmra.mxu0 %v668
        %v1099 = vpop.f32.mrf.mxu0
        %v1100 = vadd.f32 %v631, %v1099
        %v1101 = vpop.f32.mrf.mxu0
        %v1102 = vadd.f32 %v631, %v1101
        %1103 = vmatprep.mubr.f32.mxu0 0.0
        %1104 = vmatmul.mubr.f32.gmra.mxu0 %v671
        %v1105 = vpop.f32.mrf.mxu0
        %v1106 = vadd.f32 %v636, %v1105
        %v1107 = vpop.f32.mrf.mxu0
        %v1108 = vadd.f32 %v636, %v1107
        %1109 = vmatprep.mubr.f32.mxu0 0.0
        %1110 = vmatmul.mubr.f32.gmra.mxu0 %v674
        %v1111 = vpop.f32.mrf.mxu0
        %v1112 = vadd.f32 %v641, %v1111
        %v1113 = vpop.f32.mrf.mxu0
        %v1114 = vadd.f32 %v641, %v1113
        %1115 = vmatprep.mubr.f32.mxu0 0.0
        %1116 = vmatmul.mubr.f32.gmra.mxu0 %v677
        %v1117 = vpop.f32.mrf.mxu0
        %v1118 = vadd.f32 %v646, %v1117
        %v1119 = vpop.f32.mrf.mxu0
        %v1120 = vadd.f32 %v646, %v1119
        %1121 = vmatprep.mubr.f32.mxu0 0.0
        %1122 = vmatmul.mubr.f32.gmra.mxu0 %v680
        %v1123 = vpop.f32.mrf.mxu0
        %v1124 = vadd.f32 %v651, %v1123
        %v1125 = vpop.f32.mrf.mxu0
        %v1126 = vadd.f32 %v651, %v1125
        %1127 = vmatprep.mubr.f32.mxu0 0.0
        %1128 = vmatmul.mubr.f32.gmra.mxu0 %v683
        %v1129 = vpop.f32.mrf.mxu0
        %v1130 = vadd.f32 %v656, %v1129
        %v1131 = vpop.f32.mrf.mxu0
        %v1132 = vadd.f32 %v656, %v1131
        %1133 = vmatprep.mubr.f32.mxu0 0.0
        %1134 = vmatmul.mubr.f32.gmra.mxu0 %v686
        %v1135 = vpop.f32.mrf.mxu0
        %v1136 = vadd.f32 %v661, %v1135
        %v1137 = vpop.f32.mrf.mxu0
        %v1138 = vadd.f32 %v661, %v1137
        %1139 = vdwg.mxu0
        %v1140 = vtanh.pop %v755
        %v1141 = vtanh.pop %v757
        %v1142 = vtanh.pop %v868
        %v1143 = vtanh.pop %v870
        %v1144 = vtanh.pop %v981
        %v1145 = vtanh.pop %v983
        %v1146 = vtanh.pop %v1094
        %v1147 = vtanh.pop %v1096
        %v1148 = vtanh.pop %v761
        %v1149 = vtanh.pop %v763
        %v1150 = vtanh.pop %v874
        %v1151 = vtanh.pop %v876
        %v1152 = vtanh.pop %v987
        %v1153 = vtanh.pop %v989
        %v1154 = vtanh.pop %v1100
        %v1155 = vtanh.pop %v1102
        %v1156 = vtanh.pop %v767
        %v1157 = vtanh.pop %v769
        %v1158 = vtanh.pop %v880
        %v1159 = vtanh.pop %v882
        %v1160 = vtanh.pop %v993
        %v1161 = vtanh.pop %v995
        %v1162 = vtanh.pop %v1106
        %v1163 = vtanh.pop %v1108
        %v1164 = vtanh.pop %v773
        %v1165 = vtanh.pop %v775
        %v1166 = vtanh.pop %v886
        %v1167 = vtanh.pop %v888
        %v1168 = vtanh.pop %v999
        %v1169 = vtanh.pop %v1001
        %v1170 = vtanh.pop %v1112
        %v1171 = vtanh.pop %v1114
        %v1172 = vtanh.pop %v779
        %v1173 = vtanh.pop %v781
        %v1174 = vtanh.pop %v892
        %v1175 = vtanh.pop %v894
        %v1176 = vtanh.pop %v1005
        %v1177 = vtanh.pop %v1007
        %v1178 = vtanh.pop %v1118
        %v1179 = vtanh.pop %v1120
        %v1180 = vtanh.pop %v785
        %v1181 = vtanh.pop %v787
        %v1182 = vtanh.pop %v898
        %v1183 = vtanh.pop %v900
        %v1184 = vtanh.pop %v1011
        %v1185 = vtanh.pop %v1013
        %v1186 = vtanh.pop %v1124
        %v1187 = vtanh.pop %v1126
        %v1188 = vtanh.pop %v791
        %v1189 = vtanh.pop %v793
        %v1190 = vtanh.pop %v904
        %v1191 = vtanh.pop %v906
        %v1192 = vtanh.pop %v1017
        %v1193 = vtanh.pop %v1019
        %v1194 = vtanh.pop %v1130
        %v1195 = vtanh.pop %v1132
        %v1196 = vtanh.pop %v797
        %v1197 = vtanh.pop %v799
        %v1198 = vtanh.pop %v910
        %v1199 = vtanh.pop %v912
        %v1200 = vtanh.pop %v1023
        %v1201 = vtanh.pop %v1025
        %v1202 = vtanh.pop %v1136
        %v1203 = vtanh.pop %v1138
        %v1204 = vld [vmem:[%s5] sm:$0x3]
        %v1205 = vld [vmem:[%s6] sm:$0x3]
        %1207 = vset.pattern.permute.xlu0 0
        %1208 = vperm.xlu0 %1207, %v1205
        %v1209 = vpop.permute.xlu0 %1208
        %v1212 = vsel %vm663, %v1204, 0
        %1214 = vmatprep.subr.mxu0 0.0
        %1215 = vmatpush1.msra.mxu0 0.0
        %1216 = vmatprep.subr.mxu0 0.0
        %1217 = vmatpush1.msra.mxu0 0.0
        %1218 = vmatprep.subr.mxu0 0.0
        %1219 = vmatpush1.msra.mxu0 0.0
        %1220 = vmatprep.subr.mxu0 0.0
        %1221 = vmatpush1.msra.mxu0 0.0
        %1222 = vmatprep.subr.mxu0 0.0
        %1223 = vmatpush1.msra.mxu0 0.0
        %1224 = vmatprep.subr.mxu0 0.0
        %1225 = vmatpush1.msra.mxu0 0.0
        %1226 = vmatprep.subr.mxu0 0.0
        %1227 = vmatpush1.msra.mxu0 0.0
        %1228 = vmatprep.subr.mxu0 0.0
        %1229 = vmatpush1.msra.mxu0 0.0
        %1230 = vmatprep.subr.mxu0 %v1197
        %1231 = vmatpush1.msra.mxu0 %v1196
        %1232 = vmatprep.subr.mxu0 %v1189
        %1233 = vmatpush1.msra.mxu0 %v1188
        %1234 = vmatprep.subr.mxu0 %v1181
        %1235 = vmatpush1.msra.mxu0 %v1180
        %1236 = vmatprep.subr.mxu0 %v1173
        %1237 = vmatpush1.msra.mxu0 %v1172
        %1238 = vmatprep.subr.mxu0 %v1165
        %1239 = vmatpush1.msra.mxu0 %v1164
        %1240 = vmatprep.subr.mxu0 %v1157
        %1241 = vmatpush1.msra.mxu0 %v1156
        %1242 = vmatprep.subr.mxu0 %v1149
        %1243 = vmatpush1.msra.mxu0 %v1148
        %1244 = vmatprep.subr.mxu0 %v1141
        %1245 = vmatpush1.msra.mxu0 %v1140
        %1246 = vmatprep.subr.mxu0 0.0
        %1247 = vmatpush2.msra.mxu0 0.0
        %1248 = vmatprep.subr.mxu0 0.0
        %1249 = vmatpush2.msra.mxu0 0.0
        %1250 = vmatprep.subr.mxu0 0.0
        %1251 = vmatpush2.msra.mxu0 0.0
        %1252 = vmatprep.subr.mxu0 0.0
        %1253 = vmatpush2.msra.mxu0 0.0
        %1254 = vmatprep.subr.mxu0 0.0
        %1255 = vmatpush2.msra.mxu0 0.0
        %1256 = vmatprep.subr.mxu0 0.0
        %1257 = vmatpush2.msra.mxu0 0.0
        %1258 = vmatprep.subr.mxu0 0.0
        %1259 = vmatpush2.msra.mxu0 0.0
        %1260 = vmatprep.subr.mxu0 0.0
        %1261 = vmatpush2.msra.mxu0 0.0
        %1262 = vmatprep.subr.mxu0 0.0
        %1263 = vmatpush2.msra.mxu0 0.0
        %1264 = vmatprep.subr.mxu0 0.0
        %1265 = vmatpush2.msra.mxu0 0.0
        %1266 = vmatprep.subr.mxu0 0.0
        %1267 = vmatpush2.msra.mxu0 0.0
        %1268 = vmatprep.subr.mxu0 0.0
        %1269 = vmatpush2.msra.mxu0 0.0
        %1270 = vmatprep.subr.mxu0 0.0
        %1271 = vmatpush2.msra.mxu0 0.0
        %1272 = vmatprep.subr.mxu0 0.0
        %1273 = vmatpush2.msra.mxu0 0.0
        %1274 = vmatprep.subr.mxu0 0.0
        %1275 = vmatpush2.msra.mxu0 0.0
        %1276 = vmatprep.subr.mxu0 0.0
        %1277 = vmatpush2.msra.mxu0 0.0
        %1278 = vmatprep.mubr.f32.mxu0 0.0
        %1279 = vmatmul.mubr.f32.gmra.mxu0 %v1212
        %v1280 = vpop.f32.mrf.mxu0
        %v1281 = vadd.f32 %v1209, %v1280
        %v1282 = vpop.f32.mrf.mxu0
        %v1283 = vadd.f32 %v1209, %v1282
        %1284 = vdwg.mxu0
        %1285 = vmatprep.subr.mxu0 0.0
        %1286 = vmatpush1.msra.mxu0 0.0
        %1287 = vmatprep.subr.mxu0 0.0
        %1288 = vmatpush1.msra.mxu0 0.0
        %1289 = vmatprep.subr.mxu0 0.0
        %1290 = vmatpush1.msra.mxu0 0.0
        %1291 = vmatprep.subr.mxu0 0.0
        %1292 = vmatpush1.msra.mxu0 0.0
        %1293 = vmatprep.subr.mxu0 0.0
        %1294 = vmatpush1.msra.mxu0 0.0
        %1295 = vmatprep.subr.mxu0 0.0
        %1296 = vmatpush1.msra.mxu0 0.0
        %1297 = vmatprep.subr.mxu0 0.0
        %1298 = vmatpush1.msra.mxu0 0.0
        %1299 = vmatprep.subr.mxu0 0.0
        %1300 = vmatpush1.msra.mxu0 0.0
        %1301 = vmatprep.subr.mxu0 %v1199
        %1302 = vmatpush1.msra.mxu0 %v1198
        %1303 = vmatprep.subr.mxu0 %v1191
        %1304 = vmatpush1.msra.mxu0 %v1190
        %1305 = vmatprep.subr.mxu0 %v1183
        %1306 = vmatpush1.msra.mxu0 %v1182
        %1307 = vmatprep.subr.mxu0 %v1175
        %1308 = vmatpush1.msra.mxu0 %v1174
        %1309 = vmatprep.subr.mxu0 %v1167
        %1310 = vmatpush1.msra.mxu0 %v1166
        %1311 = vmatprep.subr.mxu0 %v1159
        %1312 = vmatpush1.msra.mxu0 %v1158
        %1313 = vmatprep.subr.mxu0 %v1151
        %1314 = vmatpush1.msra.mxu0 %v1150
        %1315 = vmatprep.subr.mxu0 %v1143
        %1316 = vmatpush1.msra.mxu0 %v1142
        %1317 = vmatprep.subr.mxu0 0.0
        %1318 = vmatpush2.msra.mxu0 0.0
        %1319 = vmatprep.subr.mxu0 0.0
        %1320 = vmatpush2.msra.mxu0 0.0
        %1321 = vmatprep.subr.mxu0 0.0
        %1322 = vmatpush2.msra.mxu0 0.0
        %1323 = vmatprep.subr.mxu0 0.0
        %1324 = vmatpush2.msra.mxu0 0.0
        %1325 = vmatprep.subr.mxu0 0.0
        %1326 = vmatpush2.msra.mxu0 0.0
        %1327 = vmatprep.subr.mxu0 0.0
        %1328 = vmatpush2.msra.mxu0 0.0
        %1329 = vmatprep.subr.mxu0 0.0
        %1330 = vmatpush2.msra.mxu0 0.0
        %1331 = vmatprep.subr.mxu0 0.0
        %1332 = vmatpush2.msra.mxu0 0.0
        %1333 = vmatprep.subr.mxu0 0.0
        %1334 = vmatpush2.msra.mxu0 0.0
        %1335 = vmatprep.subr.mxu0 0.0
        %1336 = vmatpush2.msra.mxu0 0.0
        %1337 = vmatprep.subr.mxu0 0.0
        %1338 = vmatpush2.msra.mxu0 0.0
        %1339 = vmatprep.subr.mxu0 0.0
        %1340 = vmatpush2.msra.mxu0 0.0
        %1341 = vmatprep.subr.mxu0 0.0
        %1342 = vmatpush2.msra.mxu0 0.0
        %1343 = vmatprep.subr.mxu0 0.0
        %1344 = vmatpush2.msra.mxu0 0.0
        %1345 = vmatprep.subr.mxu0 0.0
        %1346 = vmatpush2.msra.mxu0 0.0
        %1347 = vmatprep.subr.mxu0 0.0
        %1348 = vmatpush2.msra.mxu0 0.0
        %1349 = vmatprep.mubr.f32.mxu0 0.0
        %1350 = vmatmul.mubr.f32.gmra.mxu0 %v1212
        %v1351 = vpop.f32.mrf.mxu0
        %v1352 = vadd.f32 %v1209, %v1351
        %v1353 = vpop.f32.mrf.mxu0
        %v1354 = vadd.f32 %v1209, %v1353
        %1355 = vdwg.mxu0
        %1356 = vmatprep.subr.mxu0 0.0
        %1357 = vmatpush1.msra.mxu0 0.0
        %1358 = vmatprep.subr.mxu0 0.0
        %1359 = vmatpush1.msra.mxu0 0.0
        %1360 = vmatprep.subr.mxu0 0.0
        %1361 = vmatpush1.msra.mxu0 0.0
        %1362 = vmatprep.subr.mxu0 0.0
        %1363 = vmatpush1.msra.mxu0 0.0
        %1364 = vmatprep.subr.mxu0 0.0
        %1365 = vmatpush1.msra.mxu0 0.0
        %1366 = vmatprep.subr.mxu0 0.0
        %1367 = vmatpush1.msra.mxu0 0.0
        %1368 = vmatprep.subr.mxu0 0.0
        %1369 = vmatpush1.msra.mxu0 0.0
        %1370 = vmatprep.subr.mxu0 0.0
        %1371 = vmatpush1.msra.mxu0 0.0
        %1372 = vmatprep.subr.mxu0 %v1201
        %1373 = vmatpush1.msra.mxu0 %v1200
        %1374 = vmatprep.subr.mxu0 %v1193
        %1375 = vmatpush1.msra.mxu0 %v1192
        %1376 = vmatprep.subr.mxu0 %v1185
        %1377 = vmatpush1.msra.mxu0 %v1184
        %1378 = vmatprep.subr.mxu0 %v1177
        %1379 = vmatpush1.msra.mxu0 %v1176
        %1380 = vmatprep.subr.mxu0 %v1169
        %1381 = vmatpush1.msra.mxu0 %v1168
        %1382 = vmatprep.subr.mxu0 %v1161
        %1383 = vmatpush1.msra.mxu0 %v1160
        %1384 = vmatprep.subr.mxu0 %v1153
        %1385 = vmatpush1.msra.mxu0 %v1152
        %1386 = vmatprep.subr.mxu0 %v1145
        %1387 = vmatpush1.msra.mxu0 %v1144
        %1388 = vmatprep.subr.mxu0 0.0
        %1389 = vmatpush2.msra.mxu0 0.0
        %1390 = vmatprep.subr.mxu0 0.0
        %1391 = vmatpush2.msra.mxu0 0.0
        %1392 = vmatprep.subr.mxu0 0.0
        %1393 = vmatpush2.msra.mxu0 0.0
        %1394 = vmatprep.subr.mxu0 0.0
        %1395 = vmatpush2.msra.mxu0 0.0
        %1396 = vmatprep.subr.mxu0 0.0
        %1397 = vmatpush2.msra.mxu0 0.0
        %1398 = vmatprep.subr.mxu0 0.0
        %1399 = vmatpush2.msra.mxu0 0.0
        %1400 = vmatprep.subr.mxu0 0.0
        %1401 = vmatpush2.msra.mxu0 0.0
        %1402 = vmatprep.subr.mxu0 0.0
        %1403 = vmatpush2.msra.mxu0 0.0
        %1404 = vmatprep.subr.mxu0 0.0
        %1405 = vmatpush2.msra.mxu0 0.0
        %1406 = vmatprep.subr.mxu0 0.0
        %1407 = vmatpush2.msra.mxu0 0.0
        %1408 = vmatprep.subr.mxu0 0.0
        %1409 = vmatpush2.msra.mxu0 0.0
        %1410 = vmatprep.subr.mxu0 0.0
        %1411 = vmatpush2.msra.mxu0 0.0
        %1412 = vmatprep.subr.mxu0 0.0
        %1413 = vmatpush2.msra.mxu0 0.0
        %1414 = vmatprep.subr.mxu0 0.0
        %1415 = vmatpush2.msra.mxu0 0.0
        %1416 = vmatprep.subr.mxu0 0.0
        %1417 = vmatpush2.msra.mxu0 0.0
        %1418 = vmatprep.subr.mxu0 0.0
        %1419 = vmatpush2.msra.mxu0 0.0
        %1420 = vmatprep.mubr.f32.mxu0 0.0
        %1421 = vmatmul.mubr.f32.gmra.mxu0 %v1212
        %v1422 = vpop.f32.mrf.mxu0
        %v1423 = vadd.f32 %v1209, %v1422
        %v1424 = vpop.f32.mrf.mxu0
        %v1425 = vadd.f32 %v1209, %v1424
        %1426 = vdwg.mxu0
        %1427 = vmatprep.subr.mxu0 0.0
        %1428 = vmatpush1.msra.mxu0 0.0
        %1429 = vmatprep.subr.mxu0 0.0
        %1430 = vmatpush1.msra.mxu0 0.0
        %1431 = vmatprep.subr.mxu0 0.0
        %1432 = vmatpush1.msra.mxu0 0.0
        %1433 = vmatprep.subr.mxu0 0.0
        %1434 = vmatpush1.msra.mxu0 0.0
        %1435 = vmatprep.subr.mxu0 0.0
        %1436 = vmatpush1.msra.mxu0 0.0
        %1437 = vmatprep.subr.mxu0 0.0
        %1438 = vmatpush1.msra.mxu0 0.0
        %1439 = vmatprep.subr.mxu0 0.0
        %1440 = vmatpush1.msra.mxu0 0.0
        %1441 = vmatprep.subr.mxu0 0.0
        %1442 = vmatpush1.msra.mxu0 0.0
        %1443 = vmatprep.subr.mxu0 %v1203
        %1444 = vmatpush1.msra.mxu0 %v1202
        %1445 = vmatprep.subr.mxu0 %v1195
        %1446 = vmatpush1.msra.mxu0 %v1194
        %1447 = vmatprep.subr.mxu0 %v1187
        %1448 = vmatpush1.msra.mxu0 %v1186
        %1449 = vmatprep.subr.mxu0 %v1179
        %1450 = vmatpush1.msra.mxu0 %v1178
        %1451 = vmatprep.subr.mxu0 %v1171
        %1452 = vmatpush1.msra.mxu0 %v1170
        %1453 = vmatprep.subr.mxu0 %v1163
        %1454 = vmatpush1.msra.mxu0 %v1162
        %1455 = vmatprep.subr.mxu0 %v1155
        %1456 = vmatpush1.msra.mxu0 %v1154
        %1457 = vmatprep.subr.mxu0 %v1147
        %1458 = vmatpush1.msra.mxu0 %v1146
        %1459 = vmatprep.subr.mxu0 0.0
        %1460 = vmatpush2.msra.mxu0 0.0
        %1461 = vmatprep.subr.mxu0 0.0
        %1462 = vmatpush2.msra.mxu0 0.0
        %1463 = vmatprep.subr.mxu0 0.0
        %1464 = vmatpush2.msra.mxu0 0.0
        %1465 = vmatprep.subr.mxu0 0.0
        %1466 = vmatpush2.msra.mxu0 0.0
        %1467 = vmatprep.subr.mxu0 0.0
        %1468 = vmatpush2.msra.mxu0 0.0
        %1469 = vmatprep.subr.mxu0 0.0
        %1470 = vmatpush2.msra.mxu0 0.0
        %1471 = vmatprep.subr.mxu0 0.0
        %1472 = vmatpush2.msra.mxu0 0.0
        %1473 = vmatprep.subr.mxu0 0.0
        %1474 = vmatpush2.msra.mxu0 0.0
        %1475 = vmatprep.subr.mxu0 0.0
        %1476 = vmatpush2.msra.mxu0 0.0
        %1477 = vmatprep.subr.mxu0 0.0
        %1478 = vmatpush2.msra.mxu0 0.0
        %1479 = vmatprep.subr.mxu0 0.0
        %1480 = vmatpush2.msra.mxu0 0.0
        %1481 = vmatprep.subr.mxu0 0.0
        %1482 = vmatpush2.msra.mxu0 0.0
        %1483 = vmatprep.subr.mxu0 0.0
        %1484 = vmatpush2.msra.mxu0 0.0
        %1485 = vmatprep.subr.mxu0 0.0
        %1486 = vmatpush2.msra.mxu0 0.0
        %1487 = vmatprep.subr.mxu0 0.0
        %1488 = vmatpush2.msra.mxu0 0.0
        %1489 = vmatprep.subr.mxu0 0.0
        %1490 = vmatpush2.msra.mxu0 0.0
        %1491 = vmatprep.mubr.f32.mxu0 0.0
        %1492 = vmatmul.mubr.f32.gmra.mxu0 %v1212
        %v1493 = vpop.f32.mrf.mxu0
        %v1494 = vadd.f32 %v1209, %v1493
        %v1495 = vpop.f32.mrf.mxu0
        %v1496 = vadd.f32 %v1209, %v1495
        %1497 = vdwg.mxu0
        %v1506 = vcombine.low %v1281, %v1283
        %v1507 = vcombine.low %v1352, %v1354
        %v1509 = vunpack.c.l.s4 1983009808
        %v1510 = vunpack.c.0.s8 %v1509
        %v1511 = vlaneseq
        %v1512 = vshrl.u32 %v1511, 7
        %v1513 = vsub.s32 %v1510, %v1512
        %v1514 = vrot.slane %v1506, %v1513
        %v1516 = vunpack.c.l.s4 1983009808
        %v1517 = vunpack.c.0.s8 %v1516
        %v1518 = vlaneseq
        %v1519 = vshrl.u32 %v1518, 7
        %v1520 = vsub.s32 %v1517, %v1519
        %v1521 = vrot.slane %v1507, %v1520
        %v1522 = vcombine.low %v1514, %v1521
        %v1523 = vcombine.low %v1423, %v1425
        %v1524 = vcombine.low %v1494, %v1496
        %v1526 = vunpack.c.l.s4 1983009808
        %v1527 = vunpack.c.0.s8 %v1526
        %v1528 = vlaneseq
        %v1529 = vshrl.u32 %v1528, 7
        %v1530 = vsub.s32 %v1527, %v1529
        %v1531 = vrot.slane %v1523, %v1530
        %v1533 = vunpack.c.l.s4 1983009808
        %v1534 = vunpack.c.0.s8 %v1533
        %v1535 = vlaneseq
        %v1536 = vshrl.u32 %v1535, 7
        %v1537 = vsub.s32 %v1534, %v1536
        %v1538 = vrot.slane %v1524, %v1537
        %v1539 = vcombine.low %v1531, %v1538
        %1542 = vst [vmem:[%s270] sm:$0xff] %v1522
        %1543 = vst [vmem:[%s270 + $0x8] sm:$0xff] %v1539
        %s1544 = sand.u32 %s181, 1
        %s1545 = scalar_lea.sflag [#allocation3], %s1544
        %s1546 = sand.u32 %s181, 1
        %s1547 = smul.addr %s1546, 16
        %s1548 = scalar_lea.vmem [#allocation2], %s1547
        // Predicated region
        $region49: #{tpu_custom_call.1} parent=47 // pred_check
          %p1549 = pneg %p191
        $region50: #{tpu_custom_call.1} parent=47 // pred_check_branch
          %1551 = sbr.rel (%p1549) target = $region52
        $region51: #{tpu_custom_call.1} parent=47 // pred_region
          %s1552 = smul.u32 8, %s21
          %s1554 = ssub.s32 256, 256
          %1555 = vsyncadd %s1545, %s1554
          %s1556 = smul.addr %s1552, 32
          %s1557 = scalar_lea.hbm %s7, %s1556
          %s1559 = sshll.u32 %s1548, 4
          %s1560 = int_to_ptr.vmem [resolvable:$true] %s1559
          %1562 = dma.vmem_to_hbm [thread:$0]  %s1560, 256, %s1557, %s1545
        $region52: #{tpu_custom_call.1} parent=47 // pred_fallthru
          _
      $region48: #{tpu_custom_call.1} parent=5 // pred_fallthru
        _
      %p1563 = scmp.le.s32.totalorder 2, %s16
      // Predicated region
      $region53: #{tpu_custom_call.1} parent=5 // pred_check
        %p1564 = pneg %p1563
      $region54: #{tpu_custom_call.1} parent=5 // pred_check_branch
        %1566 = sbr.rel (%p1564) target = $region56
      $region55: #{tpu_custom_call.1} parent=5 // pred_region
        %s1567 = ssub.s32 %s16, 2
        // Predicated region
        $region57: #{tpu_custom_call.1} parent=55 // pred_check
          %p1568 = pneg %p197
        $region58: #{tpu_custom_call.1} parent=55 // pred_check_branch
          %1570 = sbr.rel (%p1568) target = $region60
        $region59: #{tpu_custom_call.1} parent=55 // pred_region
          %s1571 = sand.u32 %s182, 1
          %s1572 = scalar_lea.sflag [#allocation3], %s1571
          %s1573 = sand.u32 %s182, 1
          %s1574 = smul.addr %s1573, 16
          %s1575 = scalar_lea.vmem [#allocation2], %s1574
          %1576 = dma.done %s1572, 256
        $region60: #{tpu_custom_call.1} parent=55 // pred_fallthru
          _
      $region56: #{tpu_custom_call.1} parent=5 // pred_fallthru
        _
    $region6: #{tpu_custom_call.1} parent=1 // loop_footer
      %s20 = sadd.s32 1, %s16
    $region7: #{tpu_custom_call.1} parent=1 // loop_footer_branch
      %15 = sbr.rel target = $region3
    $region8: #{tpu_custom_call.1} parent=1 // loop_exit
      _
    %1577 = vsyncpa [#allocation3], 1
    %s1578 = scalar_lea.sflag [#allocation3], 1
    %1579 = vsyncpa %s1578, 1

</llo_original>
